<compile_context>
chip_gen: v7x
topology: tpu7x:2x2x1
jax: 0.10.0
libtpu: 0.0.40
codegen_flags: <defaults>
</compile_context>

<pallas_src>
import jax
import jax.numpy as jnp
from jax.experimental import pallas as pl
from jax.experimental.pallas import tpu as pltpu

K = 5
C_IN, L_IN = 28, 28
C1, L1 = 10, L_IN - K + 1            # (10, 24)
C2, L2 = 20, L1 - K + 1              # (20, 20)
D0 = C_IN * L_IN                     # 784   (input features per row)
D1, D1P = C1 * L1, 256               # 240 -> padded 256
D2, D2P = C2 * L2, 512               # 400 -> padded 512  (torch flatten size)
H1, H1P = 50, 64                     # 50  -> padded 64
H2, H2P = 10, 128                    # 10  -> padded 128 (lane-dense output)


def _round_up(n, m):
    return (n + m - 1) // m * m


def conv1d_as_dense(w, l_in):
    """Unfold a Conv1d (valid, stride 1) weight (C_out, C_in, K) into a dense
    (C_in*l_in, C_out*l_out) matrix such that

        conv1d(x, w).reshape(N, C_out*l_out) == x.reshape(N, C_in*l_in) @ dense

    with PyTorch's channel-major flattening on both sides.  Exact; O(weights)
    work, done once in prepare_params()."""
    c_out, c_in, k = w.shape
    l_out = l_in - k + 1
    j = jnp.arange(l_in)[:, None]         # input position
    l = jnp.arange(l_out)[None, :]        # output position
    tap = j - l                           # kernel tap connecting j -> l
    mask = (tap >= 0) & (tap < k)
    tap = jnp.clip(tap, 0, k - 1)
    dense = jnp.where(mask[None, None], w[:, :, tap], 0.0)  # (c_out,c_in,l_in,l_out)
    return dense.transpose(1, 2, 0, 3).reshape(c_in * l_in, c_out * l_out)


# ---------------------------------------------------------------------------
# Kernel: conv1+ReLU -> conv2+ReLU -> fc1+ReLU -> fc2+ReLU for one batch tile.
# All matmuls accumulate in f32 on the MXU; bias + ReLU stay in f32.
# ---------------------------------------------------------------------------
def fused_net_kernel(x_ref, w1_ref, b1_ref, w2_ref, b2_ref,
                     w3_ref, b3_ref, w4_ref, b4_ref, o_ref):
    def layer(h, w_ref, b_ref):
        w = w_ref[...]
        y = jnp.dot(h.astype(w.dtype), w, preferred_element_type=jnp.float32)
        return jnp.maximum(y + b_ref[...], 0.0)

    h = x_ref[...]                        # (bb, 784)
    h = layer(h, w1_ref, b1_ref)          # (bb, 256)  conv1 (dense-unfolded)
    h = layer(h, w2_ref, b2_ref)          # (bb, 512)  conv2 (dense-unfolded)
    h = layer(h, w3_ref, b3_ref)          # (bb, 64)   fc1
    h = layer(h, w4_ref, b4_ref)          # (bb, 128)  fc2 (lane-padded)
    o_ref[...] = h.astype(o_ref.dtype)


# ---------------------------------------------------------------------------
# One-time parameter preparation (hoisted out of the forward path).
# ---------------------------------------------------------------------------
def prepare_params(params, mxu_dtype=jnp.bfloat16):
    """Unfold convs, pad every layer width to a lane multiple, pre-transpose
    fc weights, and cast matmul operands to the MXU dtype.  Returns a tuple of
    8 arrays to pass to mnist_convnet_forward.  Call ONCE and reuse."""
    w1, b1, w2, b2, fw1, fb1, fw2, fb2 = params

    w1e = jnp.pad(conv1d_as_dense(w1, L_IN), ((0, 0), (0, D1P - D1)))        # (784,256)
    w2e = jnp.pad(conv1d_as_dense(w2, L1), ((0, D1P - D1), (0, D2P - D2)))   # (256,512)
    w3e = jnp.pad(fw1.T, ((0, D2P - D2), (0, H1P - H1)))                     # (512,64)
    w4e = jnp.pad(fw2.T, ((0, H1P - H1), (0, H2P - H2)))                     # (64,128)

    b1e = jnp.pad(jnp.repeat(b1, L1), (0, D1P - D1)).reshape(1, D1P)         # channel-major
    b2e = jnp.pad(jnp.repeat(b2, L2), (0, D2P - D2)).reshape(1, D2P)
    b3e = jnp.pad(fb1, (0, H1P - H1)).reshape(1, H1P)
    b4e = jnp.pad(fb2, (0, H2P - H2)).reshape(1, H2P)

    if mxu_dtype != jnp.float32:
        w1e, w2e, w3e, w4e = (w.astype(mxu_dtype) for w in (w1e, w2e, w3e, w4e))
    # biases stay f32 (added post-accumulation)
    return (w1e, b1e, w2e, b2e, w3e, b3e, w4e, b4e)


# ---------------------------------------------------------------------------
# Forward wrapper.
# ---------------------------------------------------------------------------
def mnist_convnet_forward(x, prepared, *, block_b=1024):
    """x: (N, 28, 28) float32 (PyTorch NCL).  prepared: output of
    prepare_params().  Returns (N, 10) float32."""
    w1e, b1e, w2e, b2e, w3e, b3e, w4e, b4e = prepared
    mxu_dtype = w1e.dtype                # matmul operand dtype (bf16 default)
    n = x.shape[0]

    # --- batch tiling --------------------------------------------------------
    # bf16-safe multiple of 16; cap at ceil(N/2) so the grid has >= 2 steps
    # whenever N allows -> both v7x TensorCores get a share of the batch axis.
    half = _round_up(-(-n // 2), 16)
    bb = max(16, min(_round_up(block_b, 16), half))
    n_pad = _round_up(n, bb)

    xf = x.reshape(n, D0).astype(mxu_dtype)       # row-major view of (C, L)
    if n_pad != n:
        xf = jnp.pad(xf, ((0, n_pad - n), (0, 0)))

    const = lambda i: (0, 0)             # weights/biases stay VMEM-resident
    single = pl.Buffered(1)              # constant blocks: no double buffering

    def wspec(shape):
        return pl.BlockSpec(shape, const, pipeline_mode=single)

    # TODO(synk): if an xprof trace shows exposed x DMA on v7x, deepen the
    # x-input pipeline with pipeline_mode=pl.Buffered(3) on x_spec below.
    x_spec = pl.BlockSpec((bb, D0), lambda i: (i, 0))

    out = pl.pallas_call(
        fused_net_kernel,
        out_shape=jax.ShapeDtypeStruct((n_pad, H2P), jnp.float32),
        grid_spec=pltpu.PrefetchScalarGridSpec(
            num_scalar_prefetch=0,
            grid=(n_pad // bb,),
            in_specs=[
                x_spec,
                wspec((D0, D1P)), wspec((1, D1P)),
                wspec((D1P, D2P)), wspec((1, D2P)),
                wspec((D2P, H1P)), wspec((1, H1P)),
                wspec((H1P, H2P)), wspec((1, H2P)),
            ],
            out_specs=pl.BlockSpec((bb, H2P), lambda i: (i, 0)),
        ),
        compiler_params=pltpu.CompilerParams(
            dimension_semantics=("parallel",),
            vmem_limit_bytes=32 * 1024 * 1024,   # lift v5e's 16 MiB scoped default
        ),
    )(xf, w1e, b1e, w2e, b2e, w3e, b3e, w4e, b4e)

    return out[:n, :H2]


# ---------- pure-JAX reference (for correctness check) ----------
def _conv1d_ref(x, w, b):
    kk = w.shape[-1]
    lout = x.shape[-1] - kk + 1
    cols = [jnp.einsum('oik,nik->no', w, x[:, :, l:l + kk]) for l in range(lout)]
    return jnp.stack(cols, axis=-1) + b[None, :, None]


def reference_forward(x, params):
    w1, b1, w2, b2, fw1, fb1, fw2, fb2 = params
    y = jnp.maximum(_conv1d_ref(x, w1, b1), 0.0)
    y = jnp.maximum(_conv1d_ref(y, w2, b2), 0.0)
    y = y.reshape(y.shape[0], -1)
    y = jnp.maximum(y @ fw1.T + fb1, 0.0)
    y = jnp.maximum(y @ fw2.T + fb2, 0.0)
    return y


if __name__ == "__main__":
    key = jax.random.PRNGKey(0)
    ks = jax.random.split(key, 9)

    # deterministic synthetic parameters (PyTorch-shaped)
    w1 = 0.1 * jax.random.normal(ks[0], (C1, C_IN, K), jnp.float32)   # conv1.weight
    b1 = 0.1 * jax.random.normal(ks[1], (C1,), jnp.float32)           # conv1.bias
    w2 = 0.1 * jax.random.normal(ks[2], (C2, C1, K), jnp.float32)     # conv2.weight
    b2 = 0.1 * jax.random.normal(ks[3], (C2,), jnp.float32)           # conv2.bias
    fw1 = 0.05 * jax.random.normal(ks[4], (H1, D2), jnp.float32)      # fc1.weight
    fb1 = 0.05 * jax.random.normal(ks[5], (H1,), jnp.float32)         # fc1.bias
    fw2 = 0.05 * jax.random.normal(ks[6], (H2, H1), jnp.float32)      # fc2.weight
    fb2 = 0.05 * jax.random.normal(ks[7], (H2,), jnp.float32)         # fc2.bias
    params = (w1, b1, w2, b2, fw1, fb1, fw2, fb2)

    # parameter prep is done ONCE here (hoisted out of the forward path)
    prepped_bf16 = jax.tree_util.tree_map(
        jax.block_until_ready, prepare_params(params))                 # default bf16
    prepped_f32 = jax.tree_util.tree_map(
        jax.block_until_ready, prepare_params(params, jnp.float32))

    fwd = jax.jit(mnist_convnet_forward, static_argnames=("block_b",))

    # input implied by the forward pass: (N, 28, 28); small batch = 2
    x = jax.random.normal(ks[8], (2, C_IN, L_IN), jnp.float32)
    ref = reference_forward(x, params)

    # 1) f32-MXU path (tight check)
    out = jax.block_until_ready(fwd(x, prepped_f32))
    assert out.shape == (2, H2), out.shape
    assert jnp.allclose(out, ref, atol=5e-4, rtol=5e-4), \
        f"f32 max abs err {jnp.max(jnp.abs(out - ref))}"

    # 2) default bf16-input / f32-accumulate MXU path; looser tolerance
    #    because operands are rounded to bf16 before each matmul.
    out_bf16 = jax.block_until_ready(fwd(x, prepped_bf16))
    assert jnp.allclose(out_bf16, ref, atol=5e-2, rtol=5e-2), \
        f"bf16 max abs err {jnp.max(jnp.abs(out_bf16 - ref))}"

    # 3) multi-tile f32 path: small explicit tile -> grid > 1, batch padding
    xb = jax.random.normal(jax.random.PRNGKey(1), (40, C_IN, L_IN), jnp.float32)
    ref_b = reference_forward(xb, params)
    out_b = jax.block_until_ready(fwd(xb, prepped_f32, block_b=16))
    assert out_b.shape == (40, H2), out_b.shape
    assert jnp.allclose(out_b, ref_b, atol=5e-4, rtol=5e-4), \
        f"tiled max abs err {jnp.max(jnp.abs(out_b - ref_b))}"

    # 4) default-settings bf16 run on the larger batch: the ceil(N/2) cap makes
    #    the grid 2 steps (v7x two-TensorCore split path).
    out_b16 = jax.block_until_ready(fwd(xb, prepped_bf16))
    assert jnp.allclose(out_b16, ref_b, atol=5e-2, rtol=5e-2), \
        f"bf16 tiled max abs err {jnp.max(jnp.abs(out_b16 - ref_b))}"

    print("KERNEL_OK")
</pallas_src>

<mosaic_0001>
module attributes {stable_mosaic.version = 11 : i64} {
  func.func @fused_net_kernel(%arg0: i32, %arg1: memref<16x784xf32, #tpu.memory_space<vmem>>, %arg2: memref<784x256xf32, #tpu.memory_space<vmem>>, %arg3: memref<1x256xf32, #tpu.memory_space<vmem>>, %arg4: memref<256x512xf32, #tpu.memory_space<vmem>>, %arg5: memref<1x512xf32, #tpu.memory_space<vmem>>, %arg6: memref<512x64xf32, #tpu.memory_space<vmem>>, %arg7: memref<1x64xf32, #tpu.memory_space<vmem>>, %arg8: memref<64x128xf32, #tpu.memory_space<vmem>>, %arg9: memref<1x128xf32, #tpu.memory_space<vmem>>, %arg10: memref<16x128xf32, #tpu.memory_space<vmem>>) attributes {dimension_semantics = [#tpu.dimension_semantics<parallel>], iteration_bounds = array<i64: 1>, scalar_prefetch = 0 : i64, scratch_operands = 0 : i64, tpu.core_type = #tpu.core_type<tc>, window_params = [{transform_indices = @transform_0, window_bounds = array<i64: 16, 784>}, {pipeline_mode = #tpu.pipeline_mode<synchronous>, transform_indices = @transform_1, window_bounds = array<i64: 784, 256>}, {pipeline_mode = #tpu.pipeline_mode<synchronous>, transform_indices = @transform_2, window_bounds = array<i64: 1, 256>}, {pipeline_mode = #tpu.pipeline_mode<synchronous>, transform_indices = @transform_3, window_bounds = array<i64: 256, 512>}, {pipeline_mode = #tpu.pipeline_mode<synchronous>, transform_indices = @transform_4, window_bounds = array<i64: 1, 512>}, {pipeline_mode = #tpu.pipeline_mode<synchronous>, transform_indices = @transform_5, window_bounds = array<i64: 512, 64>}, {pipeline_mode = #tpu.pipeline_mode<synchronous>, transform_indices = @transform_6, window_bounds = array<i64: 1, 64>}, {pipeline_mode = #tpu.pipeline_mode<synchronous>, transform_indices = @transform_7, window_bounds = array<i64: 64, 128>}, {pipeline_mode = #tpu.pipeline_mode<synchronous>, transform_indices = @transform_8, window_bounds = array<i64: 1, 128>}, {transform_indices = @transform_9, window_bounds = array<i64: 16, 128>}]} {
    %c0 = arith.constant 0 : index
    %c0_0 = arith.constant 0 : index
    %0 = vector.load %arg1[%c0, %c0_0] : memref<16x784xf32, #tpu.memory_space<vmem>>, vector<16x784xf32>
    %c0_1 = arith.constant 0 : index
    %c0_2 = arith.constant 0 : index
    %1 = vector.load %arg2[%c0_1, %c0_2] : memref<784x256xf32, #tpu.memory_space<vmem>>, vector<784x256xf32>
    %cst = arith.constant dense<0.000000e+00> : vector<16x256xf32>
    %2 = tpu.matmul %0, %1, %cst {dimension_numbers = #tpu.dot_dimension_numbers<[1], [0], [0], [1], [0, 0, 1, 1], [], []>} : vector<16x784xf32>, vector<784x256xf32>, vector<16x256xf32> -> vector<16x256xf32>
    %c0_3 = arith.constant 0 : index
    %c0_4 = arith.constant 0 : index
    %3 = vector.load %arg3[%c0_3, %c0_4] : memref<1x256xf32, #tpu.memory_space<vmem>>, vector<1x256xf32>
    %4 = vector.broadcast %3 : vector<1x256xf32> to vector<16x256xf32>
    %5 = arith.addf %2, %4 : vector<16x256xf32>
    %cst_5 = arith.constant 0.000000e+00 : f32
    %6 = vector.broadcast %cst_5 : f32 to vector<16x256xf32>
    %7 = arith.maximumf %5, %6 : vector<16x256xf32>
    %c0_6 = arith.constant 0 : index
    %c0_7 = arith.constant 0 : index
    %8 = vector.load %arg4[%c0_6, %c0_7] : memref<256x512xf32, #tpu.memory_space<vmem>>, vector<256x512xf32>
    %cst_8 = arith.constant dense<0.000000e+00> : vector<16x512xf32>
    %9 = tpu.matmul %7, %8, %cst_8 {dimension_numbers = #tpu.dot_dimension_numbers<[1], [0], [0], [1], [0, 0, 1, 1], [], []>} : vector<16x256xf32>, vector<256x512xf32>, vector<16x512xf32> -> vector<16x512xf32>
    %c0_9 = arith.constant 0 : index
    %c0_10 = arith.constant 0 : index
    %10 = vector.load %arg5[%c0_9, %c0_10] : memref<1x512xf32, #tpu.memory_space<vmem>>, vector<1x512xf32>
    %11 = vector.broadcast %10 : vector<1x512xf32> to vector<16x512xf32>
    %12 = arith.addf %9, %11 : vector<16x512xf32>
    %cst_11 = arith.constant 0.000000e+00 : f32
    %13 = vector.broadcast %cst_11 : f32 to vector<16x512xf32>
    %14 = arith.maximumf %12, %13 : vector<16x512xf32>
    %c0_12 = arith.constant 0 : index
    %c0_13 = arith.constant 0 : index
    %15 = vector.load %arg6[%c0_12, %c0_13] : memref<512x64xf32, #tpu.memory_space<vmem>>, vector<512x64xf32>
    %cst_14 = arith.constant dense<0.000000e+00> : vector<16x64xf32>
    %16 = tpu.matmul %14, %15, %cst_14 {dimension_numbers = #tpu.dot_dimension_numbers<[1], [0], [0], [1], [0, 0, 1, 1], [], []>} : vector<16x512xf32>, vector<512x64xf32>, vector<16x64xf32> -> vector<16x64xf32>
    %c0_15 = arith.constant 0 : index
    %c0_16 = arith.constant 0 : index
    %17 = vector.load %arg7[%c0_15, %c0_16] : memref<1x64xf32, #tpu.memory_space<vmem>>, vector<1x64xf32>
    %18 = vector.broadcast %17 : vector<1x64xf32> to vector<16x64xf32>
    %19 = arith.addf %16, %18 : vector<16x64xf32>
    %cst_17 = arith.constant 0.000000e+00 : f32
    %20 = vector.broadcast %cst_17 : f32 to vector<16x64xf32>
    %21 = arith.maximumf %19, %20 : vector<16x64xf32>
    %c0_18 = arith.constant 0 : index
    %c0_19 = arith.constant 0 : index
    %22 = vector.load %arg8[%c0_18, %c0_19] : memref<64x128xf32, #tpu.memory_space<vmem>>, vector<64x128xf32>
    %cst_20 = arith.constant dense<0.000000e+00> : vector<16x128xf32>
    %23 = tpu.matmul %21, %22, %cst_20 {dimension_numbers = #tpu.dot_dimension_numbers<[1], [0], [0], [1], [0, 0, 1, 1], [], []>} : vector<16x64xf32>, vector<64x128xf32>, vector<16x128xf32> -> vector<16x128xf32>
    %c0_21 = arith.constant 0 : index
    %c0_22 = arith.constant 0 : index
    %24 = vector.load %arg9[%c0_21, %c0_22] : memref<1x128xf32, #tpu.memory_space<vmem>>, vector<1x128xf32>
    %25 = vector.broadcast %24 : vector<1x128xf32> to vector<16x128xf32>
    %26 = arith.addf %23, %25 : vector<16x128xf32>
    %cst_23 = arith.constant 0.000000e+00 : f32
    %27 = vector.broadcast %cst_23 : f32 to vector<16x128xf32>
    %28 = arith.maximumf %26, %27 : vector<16x128xf32>
    %c0_24 = arith.constant 0 : index
    %c0_25 = arith.constant 0 : index
    %29 = vector.load %arg10[%c0_24, %c0_25] : memref<16x128xf32, #tpu.memory_space<vmem>>, vector<16x128xf32>
    tpu.vector_store %arg10[%c0_24, %c0_25], %28 {strides = array<i32>} : memref<16x128xf32, #tpu.memory_space<vmem>>, vector<16x128xf32>,
    return
  }
  func.func @transform_0(%arg0: i32) -> (i32, i32) {
    %c0_i32 = arith.constant 0 : i32
    %c0_i32_0 = arith.constant 0 : i32
    return %arg0, %c0_i32 : i32, i32
  }
  func.func @transform_1(%arg0: i32) -> (i32, i32) {
    %c0_i32 = arith.constant 0 : i32
    %c0_i32_0 = arith.constant 0 : i32
    %c0_i32_1 = arith.constant 0 : i32
    return %c0_i32, %c0_i32_0 : i32, i32
  }
  func.func @transform_2(%arg0: i32) -> (i32, i32) {
    %c0_i32 = arith.constant 0 : i32
    %c0_i32_0 = arith.constant 0 : i32
    %c0_i32_1 = arith.constant 0 : i32
    return %c0_i32, %c0_i32_0 : i32, i32
  }
  func.func @transform_3(%arg0: i32) -> (i32, i32) {
    %c0_i32 = arith.constant 0 : i32
    %c0_i32_0 = arith.constant 0 : i32
    %c0_i32_1 = arith.constant 0 : i32
    return %c0_i32, %c0_i32_0 : i32, i32
  }
  func.func @transform_4(%arg0: i32) -> (i32, i32) {
    %c0_i32 = arith.constant 0 : i32
    %c0_i32_0 = arith.constant 0 : i32
    %c0_i32_1 = arith.constant 0 : i32
    return %c0_i32, %c0_i32_0 : i32, i32
  }
  func.func @transform_5(%arg0: i32) -> (i32, i32) {
    %c0_i32 = arith.constant 0 : i32
    %c0_i32_0 = arith.constant 0 : i32
    %c0_i32_1 = arith.constant 0 : i32
    return %c0_i32, %c0_i32_0 : i32, i32
  }
  func.func @transform_6(%arg0: i32) -> (i32, i32) {
    %c0_i32 = arith.constant 0 : i32
    %c0_i32_0 = arith.constant 0 : i32
    %c0_i32_1 = arith.constant 0 : i32
    return %c0_i32, %c0_i32_0 : i32, i32
  }
  func.func @transform_7(%arg0: i32) -> (i32, i32) {
    %c0_i32 = arith.constant 0 : i32
    %c0_i32_0 = arith.constant 0 : i32
    %c0_i32_1 = arith.constant 0 : i32
    return %c0_i32, %c0_i32_0 : i32, i32
  }
  func.func @transform_8(%arg0: i32) -> (i32, i32) {
    %c0_i32 = arith.constant 0 : i32
    %c0_i32_0 = arith.constant 0 : i32
    %c0_i32_1 = arith.constant 0 : i32
    return %c0_i32, %c0_i32_0 : i32, i32
  }
  func.func @transform_9(%arg0: i32) -> (i32, i32) {
    %c0_i32 = arith.constant 0 : i32
    %c0_i32_0 = arith.constant 0 : i32
    return %arg0, %c0_i32 : i32, i32
  }
}

</mosaic_0001>

<llo_original>
// kernel: mnist_convnet_forward.1
$region0: #{mnist_convnet_forward.1}
  #allocation0 [shape = 'u32[]', space=smem, size = 0x4, offset = 0x4, fixed_abs, tag = 'smem constant byte address 0x4 - core index']
  #allocation1 [shape = 'u32[144,128]{1,0:T(1,128)}', space=vmem, size = 0x12000, scoped, tag = 'internal scratch']
  %s0 = inlined_call_operand.vmem [shape: f32[16,784], index: 0, kind: input, shape index: {}]
  %s1 = inlined_call_operand.hbm [shape: f32[784,256], index: 1, kind: input, shape index: {}]
  %s2 = inlined_call_operand.vmem [shape: f32[1,256], index: 2, kind: input, shape index: {}]
  %s3 = inlined_call_operand.vmem [shape: f32[256,512], index: 3, kind: input, shape index: {}]
  %s4 = inlined_call_operand.vmem [shape: f32[1,512], index: 4, kind: input, shape index: {}]
  %s5 = inlined_call_operand.vmem [shape: f32[512,64], index: 5, kind: input, shape index: {}]
  %s6 = inlined_call_operand.vmem [shape: f32[1,64], index: 6, kind: input, shape index: {}]
  %s7 = inlined_call_operand.vmem [shape: f32[64,128], index: 7, kind: input, shape index: {}]
  %s8 = inlined_call_operand.vmem [shape: f32[1,128], index: 8, kind: input, shape index: {}]
  %s9 = inlined_call_operand.vmem [shape: f32[16,128], index: 9, kind: output, shape index: {}]
  %s10 = sld [smem:[#allocation0]]
  $region50: #{mnist_convnet_forward.1} parent=0
    _
  %s12 = ssub.s32 1, %s10
  %s13 = scalar_select 0, %s12, %s10
  $region1: #{mnist_convnet_forward.1} parent=0
    #allocation2 [shape = 'u8[802816]{0}', space=vmem, size = 0xc4000, scoped, tag = 'input window, operand 1, single buffered']
    #allocation3 [shape = 's32[1]{0}', space=sflag, size = 0x4, scoped, tag = 'scoped memory for mnist_convnet_forward.1']
    %14 = vsyncpa [#allocation3], 0
    // Predicated region
    $region2: #{mnist_convnet_forward.1} parent=1 // pred_check
      _
    $region3: #{mnist_convnet_forward.1} parent=1 // pred_check_branch
      %16 = sbr.rel (0) target = $region5
    $region4: #{mnist_convnet_forward.1} parent=1 // pred_region
      _
    $region5: #{mnist_convnet_forward.1} parent=1 // pred_fallthru
      _
    // Predicated region
    $region6: #{mnist_convnet_forward.1} parent=1 // pred_check
      _
    $region7: #{mnist_convnet_forward.1} parent=1 // pred_check_branch
      %18 = sbr.rel (0) target = $region9
    $region8: #{mnist_convnet_forward.1} parent=1 // pred_region
      %s20 = ssub.s32 25088, 25088
      %21 = vsyncadd [#allocation3], %s20
      %s22 = sshll.u32 [#allocation2], 4
      %s23 = int_to_ptr.vmem [resolvable:$true] %s22
      %28 = dma.hbm_to_vmem [thread:$0]  %s1, 25088, %s23, [#allocation3], 256, 256, 16
    $region9: #{mnist_convnet_forward.1} parent=1 // pred_fallthru
      _
    // Predicated region
    $region10: #{mnist_convnet_forward.1} parent=1 // pred_check
      _
    $region11: #{mnist_convnet_forward.1} parent=1 // pred_check_branch
      %30 = sbr.rel (0) target = $region13
    $region12: #{mnist_convnet_forward.1} parent=1 // pred_region
      _
    $region13: #{mnist_convnet_forward.1} parent=1 // pred_fallthru
      _
    // Predicated region
    $region14: #{mnist_convnet_forward.1} parent=1 // pred_check
      _
    $region15: #{mnist_convnet_forward.1} parent=1 // pred_check_branch
      %32 = sbr.rel (0) target = $region17
    $region16: #{mnist_convnet_forward.1} parent=1 // pred_region
      _
    $region17: #{mnist_convnet_forward.1} parent=1 // pred_fallthru
      _
    // Predicated region
    $region18: #{mnist_convnet_forward.1} parent=1 // pred_check
      _
    $region19: #{mnist_convnet_forward.1} parent=1 // pred_check_branch
      %34 = sbr.rel (0) target = $region21
    $region20: #{mnist_convnet_forward.1} parent=1 // pred_region
      _
    $region21: #{mnist_convnet_forward.1} parent=1 // pred_fallthru
      _
    // Predicated region
    $region22: #{mnist_convnet_forward.1} parent=1 // pred_check
      _
    $region23: #{mnist_convnet_forward.1} parent=1 // pred_check_branch
      %36 = sbr.rel (0) target = $region25
    $region24: #{mnist_convnet_forward.1} parent=1 // pred_region
      _
    $region25: #{mnist_convnet_forward.1} parent=1 // pred_fallthru
      _
    // Predicated region
    $region26: #{mnist_convnet_forward.1} parent=1 // pred_check
      _
    $region27: #{mnist_convnet_forward.1} parent=1 // pred_check_branch
      %38 = sbr.rel (0) target = $region29
    $region28: #{mnist_convnet_forward.1} parent=1 // pred_region
      _
    $region29: #{mnist_convnet_forward.1} parent=1 // pred_fallthru
      _
    // Predicated region
    $region30: #{mnist_convnet_forward.1} parent=1 // pred_check
      _
    $region31: #{mnist_convnet_forward.1} parent=1 // pred_check_branch
      %40 = sbr.rel (0) target = $region33
    $region32: #{mnist_convnet_forward.1} parent=1 // pred_region
      _
    $region33: #{mnist_convnet_forward.1} parent=1 // pred_fallthru
      _
    // Predicated region
    $region34: #{mnist_convnet_forward.1} parent=1 // pred_check
      _
    $region35: #{mnist_convnet_forward.1} parent=1 // pred_check_branch
      %42 = sbr.rel (0) target = $region37
    $region36: #{mnist_convnet_forward.1} parent=1 // pred_region
      _
    $region37: #{mnist_convnet_forward.1} parent=1 // pred_fallthru
      _
    // Predicated region
    $region38: #{mnist_convnet_forward.1} parent=1 // pred_check
      _
    $region39: #{mnist_convnet_forward.1} parent=1 // pred_check_branch
      %44 = sbr.rel (0) target = $region41
    $region40: #{mnist_convnet_forward.1} parent=1 // pred_region
      %45 = dma.done [#allocation3], 25088
    $region41: #{mnist_convnet_forward.1} parent=1 // pred_fallthru
      _
    %v46 = vld [vmem:[%s0] sm:$0xff]
    %v47 = vld [vmem:[%s0 + $0x8] sm:$0xff]
    %v48 = vld [vmem:[%s0 + $0x10] sm:$0xff]
    %v49 = vld [vmem:[%s0 + $0x18] sm:$0xff]
    %v50 = vld [vmem:[%s0 + $0x20] sm:$0xff]
    %v51 = vld [vmem:[%s0 + $0x28] sm:$0xff]
    %v52 = vld [vmem:[%s0 + $0x30] sm:$0xff]
    %v53 = vld [vmem:[%s0 + $0x38] sm:$0xff]
    %v54 = vld [vmem:[%s0 + $0x40] sm:$0xff]
    %v55 = vld [vmem:[%s0 + $0x48] sm:$0xff]
    %v56 = vld [vmem:[%s0 + $0x50] sm:$0xff]
    %v57 = vld [vmem:[%s0 + $0x58] sm:$0xff]
    %v58 = vld [vmem:[%s0 + $0x60] sm:$0xff]
    %v59 = vld [vmem:[%s0 + $0x68] sm:$0xff]
    %v60 = vld [vmem:[#allocation2] sm:$0xff]
    %v61 = vld [vmem:[#allocation2 + $0x8] sm:$0xff]
    %v62 = vld [vmem:[#allocation2 + $0x10] sm:$0xff]
    %v63 = vld [vmem:[#allocation2 + $0x18] sm:$0xff]
    %v64 = vld [vmem:[#allocation2 + $0x20] sm:$0xff]
    %v65 = vld [vmem:[#allocation2 + $0x28] sm:$0xff]
    %v66 = vld [vmem:[#allocation2 + $0x30] sm:$0xff]
    %v67 = vld [vmem:[#allocation2 + $0x38] sm:$0xff]
    %v68 = vld [vmem:[#allocation2 + $0x40] sm:$0xff]
    %v69 = vld [vmem:[#allocation2 + $0x48] sm:$0xff]
    %v70 = vld [vmem:[#allocation2 + $0x50] sm:$0xff]
    %v71 = vld [vmem:[#allocation2 + $0x58] sm:$0xff]
    %v72 = vld [vmem:[#allocation2 + $0x60] sm:$0xff]
    %v73 = vld [vmem:[#allocation2 + $0x68] sm:$0xff]
    %v74 = vld [vmem:[#allocation2 + $0x70] sm:$0xff]
    %v75 = vld [vmem:[#allocation2 + $0x78] sm:$0xff]
    %v76 = vld [vmem:[#allocation2 + $0x80] sm:$0xff]
    %v77 = vld [vmem:[#allocation2 + $0x88] sm:$0xff]
    %v78 = vld [vmem:[#allocation2 + $0x90] sm:$0xff]
    %v79 = vld [vmem:[#allocation2 + $0x98] sm:$0xff]
    %v80 = vld [vmem:[#allocation2 + $0xa0] sm:$0xff]
    %v81 = vld [vmem:[#allocation2 + $0xa8] sm:$0xff]
    %v82 = vld [vmem:[#allocation2 + $0xb0] sm:$0xff]
    %v83 = vld [vmem:[#allocation2 + $0xb8] sm:$0xff]
    %v84 = vld [vmem:[#allocation2 + $0xc0] sm:$0xff]
    %v85 = vld [vmem:[#allocation2 + $0xc8] sm:$0xff]
    %v86 = vld [vmem:[#allocation2 + $0xd0] sm:$0xff]
    %v87 = vld [vmem:[#allocation2 + $0xd8] sm:$0xff]
    %v88 = vld [vmem:[#allocation2 + $0xe0] sm:$0xff]
    %v89 = vld [vmem:[#allocation2 + $0xe8] sm:$0xff]
    %v90 = vld [vmem:[#allocation2 + $0xf0] sm:$0xff]
    %v91 = vld [vmem:[#allocation2 + $0xf8] sm:$0xff]
    %v92 = vld [vmem:[#allocation2 + $0x100] sm:$0xff]
    %v93 = vld [vmem:[#allocation2 + $0x108] sm:$0xff]
    %v94 = vld [vmem:[#allocation2 + $0x110] sm:$0xff]
    %v95 = vld [vmem:[#allocation2 + $0x118] sm:$0xff]
    %v96 = vld [vmem:[#allocation2 + $0x120] sm:$0xff]
    %v97 = vld [vmem:[#allocation2 + $0x128] sm:$0xff]
    %v98 = vld [vmem:[#allocation2 + $0x130] sm:$0xff]
    %v99 = vld [vmem:[#allocation2 + $0x138] sm:$0xff]
    %v100 = vld [vmem:[#allocation2 + $0x140] sm:$0xff]
    %v101 = vld [vmem:[#allocation2 + $0x148] sm:$0xff]
    %v102 = vld [vmem:[#allocation2 + $0x150] sm:$0xff]
    %v103 = vld [vmem:[#allocation2 + $0x158] sm:$0xff]
    %v104 = vld [vmem:[#allocation2 + $0x160] sm:$0xff]
    %v105 = vld [vmem:[#allocation2 + $0x168] sm:$0xff]
    %v106 = vld [vmem:[#allocation2 + $0x170] sm:$0xff]
    %v107 = vld [vmem:[#allocation2 + $0x178] sm:$0xff]
    %v108 = vld [vmem:[#allocation2 + $0x180] sm:$0xff]
    %v109 = vld [vmem:[#allocation2 + $0x188] sm:$0xff]
    %v110 = vld [vmem:[#allocation2 + $0x190] sm:$0xff]
    %v111 = vld [vmem:[#allocation2 + $0x198] sm:$0xff]
    %v112 = vld [vmem:[#allocation2 + $0x1a0] sm:$0xff]
    %v113 = vld [vmem:[#allocation2 + $0x1a8] sm:$0xff]
    %v114 = vld [vmem:[#allocation2 + $0x1b0] sm:$0xff]
    %v115 = vld [vmem:[#allocation2 + $0x1b8] sm:$0xff]
    %v116 = vld [vmem:[#allocation2 + $0x1c0] sm:$0xff]
    %v117 = vld [vmem:[#allocation2 + $0x1c8] sm:$0xff]
    %v118 = vld [vmem:[#allocation2 + $0x1d0] sm:$0xff]
    %v119 = vld [vmem:[#allocation2 + $0x1d8] sm:$0xff]
    %v120 = vld [vmem:[#allocation2 + $0x1e0] sm:$0xff]
    %v121 = vld [vmem:[#allocation2 + $0x1e8] sm:$0xff]
    %v122 = vld [vmem:[#allocation2 + $0x1f0] sm:$0xff]
    %v123 = vld [vmem:[#allocation2 + $0x1f8] sm:$0xff]
    %v124 = vld [vmem:[#allocation2 + $0x200] sm:$0xff]
    %v125 = vld [vmem:[#allocation2 + $0x208] sm:$0xff]
    %v126 = vld [vmem:[#allocation2 + $0x210] sm:$0xff]
    %v127 = vld [vmem:[#allocation2 + $0x218] sm:$0xff]
    %v128 = vld [vmem:[#allocation2 + $0x220] sm:$0xff]
    %v129 = vld [vmem:[#allocation2 + $0x228] sm:$0xff]
    %v130 = vld [vmem:[#allocation2 + $0x230] sm:$0xff]
    %v131 = vld [vmem:[#allocation2 + $0x238] sm:$0xff]
    %v132 = vld [vmem:[#allocation2 + $0x240] sm:$0xff]
    %v133 = vld [vmem:[#allocation2 + $0x248] sm:$0xff]
    %v134 = vld [vmem:[#allocation2 + $0x250] sm:$0xff]
    %v135 = vld [vmem:[#allocation2 + $0x258] sm:$0xff]
    %v136 = vld [vmem:[#allocation2 + $0x260] sm:$0xff]
    %v137 = vld [vmem:[#allocation2 + $0x268] sm:$0xff]
    %v138 = vld [vmem:[#allocation2 + $0x270] sm:$0xff]
    %v139 = vld [vmem:[#allocation2 + $0x278] sm:$0xff]
    %v140 = vld [vmem:[#allocation2 + $0x280] sm:$0xff]
    %v141 = vld [vmem:[#allocation2 + $0x288] sm:$0xff]
    %v142 = vld [vmem:[#allocation2 + $0x290] sm:$0xff]
    %v143 = vld [vmem:[#allocation2 + $0x298] sm:$0xff]
    %v144 = vld [vmem:[#allocation2 + $0x2a0] sm:$0xff]
    %v145 = vld [vmem:[#allocation2 + $0x2a8] sm:$0xff]
    %v146 = vld [vmem:[#allocation2 + $0x2b0] sm:$0xff]
    %v147 = vld [vmem:[#allocation2 + $0x2b8] sm:$0xff]
    %v148 = vld [vmem:[#allocation2 + $0x2c0] sm:$0xff]
    %v149 = vld [vmem:[#allocation2 + $0x2c8] sm:$0xff]
    %v150 = vld [vmem:[#allocation2 + $0x2d0] sm:$0xff]
    %v151 = vld [vmem:[#allocation2 + $0x2d8] sm:$0xff]
    %v152 = vld [vmem:[#allocation2 + $0x2e0] sm:$0xff]
    %v153 = vld [vmem:[#allocation2 + $0x2e8] sm:$0xff]
    %v154 = vld [vmem:[#allocation2 + $0x2f0] sm:$0xff]
    %v155 = vld [vmem:[#allocation2 + $0x2f8] sm:$0xff]
    %v156 = vld [vmem:[#allocation2 + $0x300] sm:$0xff]
    %v157 = vld [vmem:[#allocation2 + $0x308] sm:$0xff]
    %v158 = vld [vmem:[#allocation2 + $0x310] sm:$0xff]
    %v159 = vld [vmem:[#allocation2 + $0x318] sm:$0xff]
    %v160 = vld [vmem:[#allocation2 + $0x320] sm:$0xff]
    %v161 = vld [vmem:[#allocation2 + $0x328] sm:$0xff]
    %v162 = vld [vmem:[#allocation2 + $0x330] sm:$0xff]
    %v163 = vld [vmem:[#allocation2 + $0x338] sm:$0xff]
    %v164 = vld [vmem:[#allocation2 + $0x340] sm:$0xff]
    %v165 = vld [vmem:[#allocation2 + $0x348] sm:$0xff]
    %v166 = vld [vmem:[#allocation2 + $0x350] sm:$0xff]
    %v167 = vld [vmem:[#allocation2 + $0x358] sm:$0xff]
    %v168 = vld [vmem:[#allocation2 + $0x360] sm:$0xff]
    %v169 = vld [vmem:[#allocation2 + $0x368] sm:$0xff]
    %v170 = vld [vmem:[#allocation2 + $0x370] sm:$0xff]
    %v171 = vld [vmem:[#allocation2 + $0x378] sm:$0xff]
    %v172 = vld [vmem:[#allocation2 + $0x380] sm:$0xff]
    %v173 = vld [vmem:[#allocation2 + $0x388] sm:$0xff]
    %v174 = vld [vmem:[#allocation2 + $0x390] sm:$0xff]
    %v175 = vld [vmem:[#allocation2 + $0x398] sm:$0xff]
    %v176 = vld [vmem:[#allocation2 + $0x3a0] sm:$0xff]
    %v177 = vld [vmem:[#allocation2 + $0x3a8] sm:$0xff]
    %v178 = vld [vmem:[#allocation2 + $0x3b0] sm:$0xff]
    %v179 = vld [vmem:[#allocation2 + $0x3b8] sm:$0xff]
    %v180 = vld [vmem:[#allocation2 + $0x3c0] sm:$0xff]
    %v181 = vld [vmem:[#allocation2 + $0x3c8] sm:$0xff]
    %v182 = vld [vmem:[#allocation2 + $0x3d0] sm:$0xff]
    %v183 = vld [vmem:[#allocation2 + $0x3d8] sm:$0xff]
    %v184 = vld [vmem:[#allocation2 + $0x3e0] sm:$0xff]
    %v185 = vld [vmem:[#allocation2 + $0x3e8] sm:$0xff]
    %v186 = vld [vmem:[#allocation2 + $0x3f0] sm:$0xff]
    %v187 = vld [vmem:[#allocation2 + $0x3f8] sm:$0xff]
    %v188 = vld [vmem:[#allocation2 + $0x400] sm:$0xff]
    %v189 = vld [vmem:[#allocation2 + $0x408] sm:$0xff]
    %v190 = vld [vmem:[#allocation2 + $0x410] sm:$0xff]
    %v191 = vld [vmem:[#allocation2 + $0x418] sm:$0xff]
    %v192 = vld [vmem:[#allocation2 + $0x420] sm:$0xff]
    %v193 = vld [vmem:[#allocation2 + $0x428] sm:$0xff]
    %v194 = vld [vmem:[#allocation2 + $0x430] sm:$0xff]
    %v195 = vld [vmem:[#allocation2 + $0x438] sm:$0xff]
    %v196 = vld [vmem:[#allocation2 + $0x440] sm:$0xff]
    %v197 = vld [vmem:[#allocation2 + $0x448] sm:$0xff]
    %v198 = vld [vmem:[#allocation2 + $0x450] sm:$0xff]
    %v199 = vld [vmem:[#allocation2 + $0x458] sm:$0xff]
    %v200 = vld [vmem:[#allocation2 + $0x460] sm:$0xff]
    %v201 = vld [vmem:[#allocation2 + $0x468] sm:$0xff]
    %v202 = vld [vmem:[#allocation2 + $0x470] sm:$0xff]
    %v203 = vld [vmem:[#allocation2 + $0x478] sm:$0xff]
    %v204 = vld [vmem:[#allocation2 + $0x480] sm:$0xff]
    %v205 = vld [vmem:[#allocation2 + $0x488] sm:$0xff]
    %v206 = vld [vmem:[#allocation2 + $0x490] sm:$0xff]
    %v207 = vld [vmem:[#allocation2 + $0x498] sm:$0xff]
    %v208 = vld [vmem:[#allocation2 + $0x4a0] sm:$0xff]
    %v209 = vld [vmem:[#allocation2 + $0x4a8] sm:$0xff]
    %v210 = vld [vmem:[#allocation2 + $0x4b0] sm:$0xff]
    %v211 = vld [vmem:[#allocation2 + $0x4b8] sm:$0xff]
    %v212 = vld [vmem:[#allocation2 + $0x4c0] sm:$0xff]
    %v213 = vld [vmem:[#allocation2 + $0x4c8] sm:$0xff]
    %v214 = vld [vmem:[#allocation2 + $0x4d0] sm:$0xff]
    %v215 = vld [vmem:[#allocation2 + $0x4d8] sm:$0xff]
    %v216 = vld [vmem:[#allocation2 + $0x4e0] sm:$0xff]
    %v217 = vld [vmem:[#allocation2 + $0x4e8] sm:$0xff]
    %v218 = vld [vmem:[#allocation2 + $0x4f0] sm:$0xff]
    %v219 = vld [vmem:[#allocation2 + $0x4f8] sm:$0xff]
    %v220 = vld [vmem:[#allocation2 + $0x500] sm:$0xff]
    %v221 = vld [vmem:[#allocation2 + $0x508] sm:$0xff]
    %v222 = vld [vmem:[#allocation2 + $0x510] sm:$0xff]
    %v223 = vld [vmem:[#allocation2 + $0x518] sm:$0xff]
    %v224 = vld [vmem:[#allocation2 + $0x520] sm:$0xff]
    %v225 = vld [vmem:[#allocation2 + $0x528] sm:$0xff]
    %v226 = vld [vmem:[#allocation2 + $0x530] sm:$0xff]
    %v227 = vld [vmem:[#allocation2 + $0x538] sm:$0xff]
    %v228 = vld [vmem:[#allocation2 + $0x540] sm:$0xff]
    %v229 = vld [vmem:[#allocation2 + $0x548] sm:$0xff]
    %v230 = vld [vmem:[#allocation2 + $0x550] sm:$0xff]
    %v231 = vld [vmem:[#allocation2 + $0x558] sm:$0xff]
    %v232 = vld [vmem:[#allocation2 + $0x560] sm:$0xff]
    %v233 = vld [vmem:[#allocation2 + $0x568] sm:$0xff]
    %v234 = vld [vmem:[#allocation2 + $0x570] sm:$0xff]
    %v235 = vld [vmem:[#allocation2 + $0x578] sm:$0xff]
    %v236 = vld [vmem:[#allocation2 + $0x580] sm:$0xff]
    %v237 = vld [vmem:[#allocation2 + $0x588] sm:$0xff]
    %v238 = vld [vmem:[#allocation2 + $0x590] sm:$0xff]
    %v239 = vld [vmem:[#allocation2 + $0x598] sm:$0xff]
    %v240 = vld [vmem:[#allocation2 + $0x5a0] sm:$0xff]
    %v241 = vld [vmem:[#allocation2 + $0x5a8] sm:$0xff]
    %v242 = vld [vmem:[#allocation2 + $0x5b0] sm:$0xff]
    %v243 = vld [vmem:[#allocation2 + $0x5b8] sm:$0xff]
    %v244 = vld [vmem:[#allocation2 + $0x5c0] sm:$0xff]
    %v245 = vld [vmem:[#allocation2 + $0x5c8] sm:$0xff]
    %v246 = vld [vmem:[#allocation2 + $0x5d0] sm:$0xff]
    %v247 = vld [vmem:[#allocation2 + $0x5d8] sm:$0xff]
    %v248 = vld [vmem:[#allocation2 + $0x5e0] sm:$0xff]
    %v249 = vld [vmem:[#allocation2 + $0x5e8] sm:$0xff]
    %v250 = vld [vmem:[#allocation2 + $0x5f0] sm:$0xff]
    %v251 = vld [vmem:[#allocation2 + $0x5f8] sm:$0xff]
    %v252 = vld [vmem:[#allocation2 + $0x600] sm:$0xff]
    %v253 = vld [vmem:[#allocation2 + $0x608] sm:$0xff]
    %v254 = vld [vmem:[#allocation2 + $0x610] sm:$0xff]
    %v255 = vld [vmem:[#allocation2 + $0x618] sm:$0xff]
    %v256 = vld [vmem:[%s2] sm:$0x3]
    %v258 = vlaneseq
    %v259 = vshrl.u32 %v258, 7
    %v260 = vsub.s32 0, %v259
    %v261 = vrot.slane %v256, %v260
    %v262 = vlaneseq
    %v263 = vshrl.u32 %v262, 7
    %v264 = vsub.s32 1, %v263
    %v265 = vrot.slane %v256, %v264
    %vm268 = vcmask 130048
    %v270 = vsel %vm268, %v52, 0
    %v273 = vsel %vm268, %v59, 0
    %275 = vmatprep.subr.mxu0 %v61
    %276 = vmatpush1.msra.mxu0 %v60
    %277 = vmatprep.subr.mxu0 %v63
    %278 = vmatpush1.msra.mxu0 %v62
    %279 = vmatprep.subr.mxu0 %v65
    %280 = vmatpush1.msra.mxu0 %v64
    %281 = vmatprep.subr.mxu0 %v67
    %282 = vmatpush1.msra.mxu0 %v66
    %283 = vmatprep.subr.mxu0 %v69
    %284 = vmatpush1.msra.mxu0 %v68
    %285 = vmatprep.subr.mxu0 %v71
    %286 = vmatpush1.msra.mxu0 %v70
    %287 = vmatprep.subr.mxu0 %v73
    %288 = vmatpush1.msra.mxu0 %v72
    %289 = vmatprep.subr.mxu0 %v75
    %290 = vmatpush1.msra.mxu0 %v74
    %291 = vmatprep.subr.mxu0 %v77
    %292 = vmatpush1.msra.mxu0 %v76
    %293 = vmatprep.subr.mxu0 %v79
    %294 = vmatpush1.msra.mxu0 %v78
    %295 = vmatprep.subr.mxu0 %v81
    %296 = vmatpush1.msra.mxu0 %v80
    %297 = vmatprep.subr.mxu0 %v83
    %298 = vmatpush1.msra.mxu0 %v82
    %299 = vmatprep.subr.mxu0 %v85
    %300 = vmatpush1.msra.mxu0 %v84
    %301 = vmatprep.subr.mxu0 %v87
    %302 = vmatpush1.msra.mxu0 %v86
    %303 = vmatprep.subr.mxu0 %v89
    %304 = vmatpush1.msra.mxu0 %v88
    %305 = vmatprep.subr.mxu0 %v91
    %306 = vmatpush1.msra.mxu0 %v90
    %307 = vmatprep.subr.mxu0 %v93
    %308 = vmatpush1.msra.mxu0 %v92
    %309 = vmatprep.subr.mxu0 %v95
    %310 = vmatpush1.msra.mxu0 %v94
    %311 = vmatprep.subr.mxu0 %v97
    %312 = vmatpush1.msra.mxu0 %v96
    %313 = vmatprep.subr.mxu0 %v99
    %314 = vmatpush1.msra.mxu0 %v98
    %315 = vmatprep.subr.mxu0 %v101
    %316 = vmatpush1.msra.mxu0 %v100
    %317 = vmatprep.subr.mxu0 %v103
    %318 = vmatpush1.msra.mxu0 %v102
    %319 = vmatprep.subr.mxu0 %v105
    %320 = vmatpush1.msra.mxu0 %v104
    %321 = vmatprep.subr.mxu0 %v107
    %322 = vmatpush1.msra.mxu0 %v106
    %323 = vmatprep.subr.mxu0 %v109
    %324 = vmatpush1.msra.mxu0 %v108
    %325 = vmatprep.subr.mxu0 %v111
    %326 = vmatpush1.msra.mxu0 %v110
    %327 = vmatprep.subr.mxu0 %v113
    %328 = vmatpush1.msra.mxu0 %v112
    %329 = vmatprep.subr.mxu0 %v115
    %330 = vmatpush1.msra.mxu0 %v114
    %331 = vmatprep.subr.mxu0 %v117
    %332 = vmatpush1.msra.mxu0 %v116
    %333 = vmatprep.subr.mxu0 %v119
    %334 = vmatpush1.msra.mxu0 %v118
    %335 = vmatprep.subr.mxu0 %v121
    %336 = vmatpush1.msra.mxu0 %v120
    %337 = vmatprep.subr.mxu0 %v123
    %338 = vmatpush1.msra.mxu0 %v122
    %339 = vmatprep.mubr.f32.mxu0 %v47
    %340 = vmatmul.mubr.f32.gmra.mrb[0].mxu0 %v46
    %v341 = vpop.f32.mrb[0].mxu0
    %v342 = vadd.f32 %v261, %v341
    %v343 = vpop.f32.mrb[0].mxu0
    %v344 = vadd.f32 %v265, %v343
    %345 = vmatprep.mubr.f32.mxu0 %v54
    %346 = vmatmul.mubr.f32.gmra.mrb[0].mxu0 %v53
    %v347 = vpop.f32.mrb[0].mxu0
    %v348 = vadd.f32 %v261, %v347
    %v349 = vpop.f32.mrb[0].mxu0
    %v350 = vadd.f32 %v265, %v349
    %351 = vdwg.mxu0
    %352 = vmatprep.subr.mxu0 %v125
    %353 = vmatpush1.msra.mxu0 %v124
    %354 = vmatprep.subr.mxu0 %v127
    %355 = vmatpush1.msra.mxu0 %v126
    %356 = vmatprep.subr.mxu0 %v129
    %357 = vmatpush1.msra.mxu0 %v128
    %358 = vmatprep.subr.mxu0 %v131
    %359 = vmatpush1.msra.mxu0 %v130
    %360 = vmatprep.subr.mxu0 %v133
    %361 = vmatpush1.msra.mxu0 %v132
    %362 = vmatprep.subr.mxu0 %v135
    %363 = vmatpush1.msra.mxu0 %v134
    %364 = vmatprep.subr.mxu0 %v137
    %365 = vmatpush1.msra.mxu0 %v136
    %366 = vmatprep.subr.mxu0 %v139
    %367 = vmatpush1.msra.mxu0 %v138
    %368 = vmatprep.subr.mxu0 %v141
    %369 = vmatpush1.msra.mxu0 %v140
    %370 = vmatprep.subr.mxu0 %v143
    %371 = vmatpush1.msra.mxu0 %v142
    %372 = vmatprep.subr.mxu0 %v145
    %373 = vmatpush1.msra.mxu0 %v144
    %374 = vmatprep.subr.mxu0 %v147
    %375 = vmatpush1.msra.mxu0 %v146
    %376 = vmatprep.subr.mxu0 %v149
    %377 = vmatpush1.msra.mxu0 %v148
    %378 = vmatprep.subr.mxu0 %v151
    %379 = vmatpush1.msra.mxu0 %v150
    %380 = vmatprep.subr.mxu0 %v153
    %381 = vmatpush1.msra.mxu0 %v152
    %382 = vmatprep.subr.mxu0 %v155
    %383 = vmatpush1.msra.mxu0 %v154
    %384 = vmatprep.subr.mxu0 %v157
    %385 = vmatpush1.msra.mxu0 %v156
    %386 = vmatprep.subr.mxu0 %v159
    %387 = vmatpush1.msra.mxu0 %v158
    %388 = vmatprep.subr.mxu0 %v161
    %389 = vmatpush1.msra.mxu0 %v160
    %390 = vmatprep.subr.mxu0 %v163
    %391 = vmatpush1.msra.mxu0 %v162
    %392 = vmatprep.subr.mxu0 %v165
    %393 = vmatpush1.msra.mxu0 %v164
    %394 = vmatprep.subr.mxu0 %v167
    %395 = vmatpush1.msra.mxu0 %v166
    %396 = vmatprep.subr.mxu0 %v169
    %397 = vmatpush1.msra.mxu0 %v168
    %398 = vmatprep.subr.mxu0 %v171
    %399 = vmatpush1.msra.mxu0 %v170
    %400 = vmatprep.subr.mxu0 %v173
    %401 = vmatpush1.msra.mxu0 %v172
    %402 = vmatprep.subr.mxu0 %v175
    %403 = vmatpush1.msra.mxu0 %v174
    %404 = vmatprep.subr.mxu0 %v177
    %405 = vmatpush1.msra.mxu0 %v176
    %406 = vmatprep.subr.mxu0 %v179
    %407 = vmatpush1.msra.mxu0 %v178
    %408 = vmatprep.subr.mxu0 %v181
    %409 = vmatpush1.msra.mxu0 %v180
    %410 = vmatprep.subr.mxu0 %v183
    %411 = vmatpush1.msra.mxu0 %v182
    %412 = vmatprep.subr.mxu0 %v185
    %413 = vmatpush1.msra.mxu0 %v184
    %414 = vmatprep.subr.mxu0 %v187
    %415 = vmatpush1.msra.mxu0 %v186
    %416 = vmatprep.mubr.f32.mxu0 %v49
    %417 = vmatmul.mubr.f32.gmra.mrb[0].mxu0 %v48
    %v418 = vpop.f32.mrb[0].mxu0
    %v419 = vadd.f32 %v342, %v418
    %v420 = vpop.f32.mrb[0].mxu0
    %v421 = vadd.f32 %v344, %v420
    %422 = vmatprep.mubr.f32.mxu0 %v56
    %423 = vmatmul.mubr.f32.gmra.mrb[0].mxu0 %v55
    %v424 = vpop.f32.mrb[0].mxu0
    %v425 = vadd.f32 %v348, %v424
    %v426 = vpop.f32.mrb[0].mxu0
    %v427 = vadd.f32 %v350, %v426
    %428 = vdwg.mxu0
    %429 = vmatprep.subr.mxu0 %v189
    %430 = vmatpush1.msra.mxu0 %v188
    %431 = vmatprep.subr.mxu0 %v191
    %432 = vmatpush1.msra.mxu0 %v190
    %433 = vmatprep.subr.mxu0 %v193
    %434 = vmatpush1.msra.mxu0 %v192
    %435 = vmatprep.subr.mxu0 %v195
    %436 = vmatpush1.msra.mxu0 %v194
    %437 = vmatprep.subr.mxu0 %v197
    %438 = vmatpush1.msra.mxu0 %v196
    %439 = vmatprep.subr.mxu0 %v199
    %440 = vmatpush1.msra.mxu0 %v198
    %441 = vmatprep.subr.mxu0 %v201
    %442 = vmatpush1.msra.mxu0 %v200
    %443 = vmatprep.subr.mxu0 %v203
    %444 = vmatpush1.msra.mxu0 %v202
    %445 = vmatprep.subr.mxu0 %v205
    %446 = vmatpush1.msra.mxu0 %v204
    %447 = vmatprep.subr.mxu0 %v207
    %448 = vmatpush1.msra.mxu0 %v206
    %449 = vmatprep.subr.mxu0 %v209
    %450 = vmatpush1.msra.mxu0 %v208
    %451 = vmatprep.subr.mxu0 %v211
    %452 = vmatpush1.msra.mxu0 %v210
    %453 = vmatprep.subr.mxu0 %v213
    %454 = vmatpush1.msra.mxu0 %v212
    %455 = vmatprep.subr.mxu0 %v215
    %456 = vmatpush1.msra.mxu0 %v214
    %457 = vmatprep.subr.mxu0 %v217
    %458 = vmatpush1.msra.mxu0 %v216
    %459 = vmatprep.subr.mxu0 %v219
    %460 = vmatpush1.msra.mxu0 %v218
    %461 = vmatprep.subr.mxu0 %v221
    %462 = vmatpush1.msra.mxu0 %v220
    %463 = vmatprep.subr.mxu0 %v223
    %464 = vmatpush1.msra.mxu0 %v222
    %465 = vmatprep.subr.mxu0 %v225
    %466 = vmatpush1.msra.mxu0 %v224
    %467 = vmatprep.subr.mxu0 %v227
    %468 = vmatpush1.msra.mxu0 %v226
    %469 = vmatprep.subr.mxu0 %v229
    %470 = vmatpush1.msra.mxu0 %v228
    %471 = vmatprep.subr.mxu0 %v231
    %472 = vmatpush1.msra.mxu0 %v230
    %473 = vmatprep.subr.mxu0 %v233
    %474 = vmatpush1.msra.mxu0 %v232
    %475 = vmatprep.subr.mxu0 %v235
    %476 = vmatpush1.msra.mxu0 %v234
    %477 = vmatprep.subr.mxu0 %v237
    %478 = vmatpush1.msra.mxu0 %v236
    %479 = vmatprep.subr.mxu0 %v239
    %480 = vmatpush1.msra.mxu0 %v238
    %481 = vmatprep.subr.mxu0 %v241
    %482 = vmatpush1.msra.mxu0 %v240
    %483 = vmatprep.subr.mxu0 %v243
    %484 = vmatpush1.msra.mxu0 %v242
    %485 = vmatprep.subr.mxu0 %v245
    %486 = vmatpush1.msra.mxu0 %v244
    %487 = vmatprep.subr.mxu0 %v247
    %488 = vmatpush1.msra.mxu0 %v246
    %489 = vmatprep.subr.mxu0 %v249
    %490 = vmatpush1.msra.mxu0 %v248
    %491 = vmatprep.subr.mxu0 %v251
    %492 = vmatpush1.msra.mxu0 %v250
    %493 = vmatprep.mubr.f32.mxu0 %v51
    %494 = vmatmul.mubr.f32.gmra.mrb[0].mxu0 %v50
    %v495 = vpop.f32.mrb[0].mxu0
    %v496 = vadd.f32 %v419, %v495
    %v497 = vpop.f32.mrb[0].mxu0
    %v498 = vadd.f32 %v421, %v497
    %499 = vmatprep.mubr.f32.mxu0 %v58
    %500 = vmatmul.mubr.f32.gmra.mrb[0].mxu0 %v57
    %v501 = vpop.f32.mrb[0].mxu0
    %v502 = vadd.f32 %v425, %v501
    %v503 = vpop.f32.mrb[0].mxu0
    %v504 = vadd.f32 %v427, %v503
    %505 = vdwg.mxu0
    %506 = vmatprep.subr.mxu0 %v253
    %507 = vmatpush1.msra.mxu0 %v252
    %508 = vmatprep.subr.mxu0 %v255
    %509 = vmatpush1.msra.mxu0 %v254
    %510 = vmatprep.subr.mxu0 0.0
    %511 = vmatpush1.msra.mxu0 0.0
    %512 = vmatprep.subr.mxu0 0.0
    %513 = vmatpush1.msra.mxu0 0.0
    %514 = vmatprep.subr.mxu0 0.0
    %515 = vmatpush1.msra.mxu0 0.0
    %516 = vmatprep.subr.mxu0 0.0
    %517 = vmatpush1.msra.mxu0 0.0
    %518 = vmatprep.subr.mxu0 0.0
    %519 = vmatpush1.msra.mxu0 0.0
    %520 = vmatprep.subr.mxu0 0.0
    %521 = vmatpush1.msra.mxu0 0.0
    %522 = vmatprep.subr.mxu0 0.0
    %523 = vmatpush1.msra.mxu0 0.0
    %524 = vmatprep.subr.mxu0 0.0
    %525 = vmatpush1.msra.mxu0 0.0
    %526 = vmatprep.subr.mxu0 0.0
    %527 = vmatpush1.msra.mxu0 0.0
    %528 = vmatprep.subr.mxu0 0.0
    %529 = vmatpush1.msra.mxu0 0.0
    %530 = vmatprep.subr.mxu0 0.0
    %531 = vmatpush1.msra.mxu0 0.0
    %532 = vmatprep.subr.mxu0 0.0
    %533 = vmatpush1.msra.mxu0 0.0
    %534 = vmatprep.subr.mxu0 0.0
    %535 = vmatpush1.msra.mxu0 0.0
    %536 = vmatprep.subr.mxu0 0.0
    %537 = vmatpush1.msra.mxu0 0.0
    %538 = vmatprep.subr.mxu0 0.0
    %539 = vmatpush1.msra.mxu0 0.0
    %540 = vmatprep.subr.mxu0 0.0
    %541 = vmatpush1.msra.mxu0 0.0
    %542 = vmatprep.subr.mxu0 0.0
    %543 = vmatpush1.msra.mxu0 0.0
    %544 = vmatprep.subr.mxu0 0.0
    %545 = vmatpush1.msra.mxu0 0.0
    %546 = vmatprep.subr.mxu0 0.0
    %547 = vmatpush1.msra.mxu0 0.0
    %548 = vmatprep.subr.mxu0 0.0
    %549 = vmatpush1.msra.mxu0 0.0
    %550 = vmatprep.subr.mxu0 0.0
    %551 = vmatpush1.msra.mxu0 0.0
    %552 = vmatprep.subr.mxu0 0.0
    %553 = vmatpush1.msra.mxu0 0.0
    %554 = vmatprep.subr.mxu0 0.0
    %555 = vmatpush1.msra.mxu0 0.0
    %556 = vmatprep.subr.mxu0 0.0
    %557 = vmatpush1.msra.mxu0 0.0
    %558 = vmatprep.subr.mxu0 0.0
    %559 = vmatpush1.msra.mxu0 0.0
    %560 = vmatprep.subr.mxu0 0.0
    %561 = vmatpush1.msra.mxu0 0.0
    %562 = vmatprep.subr.mxu0 0.0
    %563 = vmatpush1.msra.mxu0 0.0
    %564 = vmatprep.subr.mxu0 0.0
    %565 = vmatpush1.msra.mxu0 0.0
    %566 = vmatprep.subr.mxu0 0.0
    %567 = vmatpush1.msra.mxu0 0.0
    %568 = vmatprep.subr.mxu0 0.0
    %569 = vmatpush1.msra.mxu0 0.0
    %570 = vmatprep.mubr.f32.mxu0 0.0
    %571 = vmatmul.mubr.f32.gmra.mrb[0].mxu0 %v270
    %v572 = vpop.f32.mrb[0].mxu0
    %v573 = vadd.f32 %v496, %v572
    %v574 = vpop.f32.mrb[0].mxu0
    %v575 = vadd.f32 %v498, %v574
    %576 = vmatprep.mubr.f32.mxu0 0.0
    %577 = vmatmul.mubr.f32.gmra.mrb[0].mxu0 %v273
    %v578 = vpop.f32.mrb[0].mxu0
    %v579 = vadd.f32 %v502, %v578
    %v580 = vpop.f32.mrb[0].mxu0
    %v581 = vadd.f32 %v504, %v580
    %582 = vdwg.mxu0
    %v583 = vmax.f32 %v573, 0.0
    %v584 = vmax.f32 %v575, 0.0
    %v585 = vmax.f32 %v579, 0.0
    %v586 = vmax.f32 %v581, 0.0
    %v587 = vld [vmem:[%s3] sm:$0xff]
    %v588 = vld [vmem:[%s3 + $0x8] sm:$0xff]
    %v589 = vld [vmem:[%s3 + $0x10] sm:$0xff]
    %v590 = vld [vmem:[%s3 + $0x18] sm:$0xff]
    %v591 = vld [vmem:[%s3 + $0x20] sm:$0xff]
    %v592 = vld [vmem:[%s3 + $0x28] sm:$0xff]
    %v593 = vld [vmem:[%s3 + $0x30] sm:$0xff]
    %v594 = vld [vmem:[%s3 + $0x38] sm:$0xff]
    %v595 = vld [vmem:[%s3 + $0x40] sm:$0xff]
    %v596 = vld [vmem:[%s3 + $0x48] sm:$0xff]
    %v597 = vld [vmem:[%s3 + $0x50] sm:$0xff]
    %v598 = vld [vmem:[%s3 + $0x58] sm:$0xff]
    %v599 = vld [vmem:[%s3 + $0x60] sm:$0xff]
    %v600 = vld [vmem:[%s3 + $0x68] sm:$0xff]
    %v601 = vld [vmem:[%s3 + $0x70] sm:$0xff]
    %v602 = vld [vmem:[%s3 + $0x78] sm:$0xff]
    %v603 = vld [vmem:[%s3 + $0x80] sm:$0xff]
    %v604 = vld [vmem:[%s3 + $0x88] sm:$0xff]
    %v605 = vld [vmem:[%s3 + $0x90] sm:$0xff]
    %v606 = vld [vmem:[%s3 + $0x98] sm:$0xff]
    %v607 = vld [vmem:[%s3 + $0xa0] sm:$0xff]
    %v608 = vld [vmem:[%s3 + $0xa8] sm:$0xff]
    %v609 = vld [vmem:[%s3 + $0xb0] sm:$0xff]
    %v610 = vld [vmem:[%s3 + $0xb8] sm:$0xff]
    %v611 = vld [vmem:[%s3 + $0xc0] sm:$0xff]
    %v612 = vld [vmem:[%s3 + $0xc8] sm:$0xff]
    %v613 = vld [vmem:[%s3 + $0xd0] sm:$0xff]
    %v614 = vld [vmem:[%s3 + $0xd8] sm:$0xff]
    %v615 = vld [vmem:[%s3 + $0xe0] sm:$0xff]
    %v616 = vld [vmem:[%s3 + $0xe8] sm:$0xff]
    %v617 = vld [vmem:[%s3 + $0xf0] sm:$0xff]
    %v618 = vld [vmem:[%s3 + $0xf8] sm:$0xff]
    %v619 = vld [vmem:[%s3 + $0x100] sm:$0xff]
    %v620 = vld [vmem:[%s3 + $0x108] sm:$0xff]
    %v621 = vld [vmem:[%s3 + $0x110] sm:$0xff]
    %v622 = vld [vmem:[%s3 + $0x118] sm:$0xff]
    %v623 = vld [vmem:[%s3 + $0x120] sm:$0xff]
    %v624 = vld [vmem:[%s3 + $0x128] sm:$0xff]
    %v625 = vld [vmem:[%s3 + $0x130] sm:$0xff]
    %v626 = vld [vmem:[%s3 + $0x138] sm:$0xff]
    %v627 = vld [vmem:[%s3 + $0x140] sm:$0xff]
    %v628 = vld [vmem:[%s3 + $0x148] sm:$0xff]
    %v629 = vld [vmem:[%s3 + $0x150] sm:$0xff]
    %v630 = vld [vmem:[%s3 + $0x158] sm:$0xff]
    %v631 = vld [vmem:[%s3 + $0x160] sm:$0xff]
    %v632 = vld [vmem:[%s3 + $0x168] sm:$0xff]
    %v633 = vld [vmem:[%s3 + $0x170] sm:$0xff]
    %v634 = vld [vmem:[%s3 + $0x178] sm:$0xff]
    %v635 = vld [vmem:[%s3 + $0x180] sm:$0xff]
    %v636 = vld [vmem:[%s3 + $0x188] sm:$0xff]
    %v637 = vld [vmem:[%s3 + $0x190] sm:$0xff]
    %v638 = vld [vmem:[%s3 + $0x198] sm:$0xff]
    %v639 = vld [vmem:[%s3 + $0x1a0] sm:$0xff]
    %v640 = vld [vmem:[%s3 + $0x1a8] sm:$0xff]
    %v641 = vld [vmem:[%s3 + $0x1b0] sm:$0xff]
    %v642 = vld [vmem:[%s3 + $0x1b8] sm:$0xff]
    %v643 = vld [vmem:[%s3 + $0x1c0] sm:$0xff]
    %v644 = vld [vmem:[%s3 + $0x1c8] sm:$0xff]
    %v645 = vld [vmem:[%s3 + $0x1d0] sm:$0xff]
    %v646 = vld [vmem:[%s3 + $0x1d8] sm:$0xff]
    %v647 = vld [vmem:[%s3 + $0x1e0] sm:$0xff]
    %v648 = vld [vmem:[%s3 + $0x1e8] sm:$0xff]
    %v649 = vld [vmem:[%s3 + $0x1f0] sm:$0xff]
    %v650 = vld [vmem:[%s3 + $0x1f8] sm:$0xff]
    %v651 = vld [vmem:[%s3 + $0x200] sm:$0xff]
    %v652 = vld [vmem:[%s3 + $0x208] sm:$0xff]
    %v653 = vld [vmem:[%s3 + $0x210] sm:$0xff]
    %v654 = vld [vmem:[%s3 + $0x218] sm:$0xff]
    %v655 = vld [vmem:[%s3 + $0x220] sm:$0xff]
    %v656 = vld [vmem:[%s3 + $0x228] sm:$0xff]
    %v657 = vld [vmem:[%s3 + $0x230] sm:$0xff]
    %v658 = vld [vmem:[%s3 + $0x238] sm:$0xff]
    %v659 = vld [vmem:[%s3 + $0x240] sm:$0xff]
    %v660 = vld [vmem:[%s3 + $0x248] sm:$0xff]
    %v661 = vld [vmem:[%s3 + $0x250] sm:$0xff]
    %v662 = vld [vmem:[%s3 + $0x258] sm:$0xff]
    %v663 = vld [vmem:[%s3 + $0x260] sm:$0xff]
    %v664 = vld [vmem:[%s3 + $0x268] sm:$0xff]
    %v665 = vld [vmem:[%s3 + $0x270] sm:$0xff]
    %v666 = vld [vmem:[%s3 + $0x278] sm:$0xff]
    %v667 = vld [vmem:[%s3 + $0x280] sm:$0xff]
    %v668 = vld [vmem:[%s3 + $0x288] sm:$0xff]
    %v669 = vld [vmem:[%s3 + $0x290] sm:$0xff]
    %v670 = vld [vmem:[%s3 + $0x298] sm:$0xff]
    %v671 = vld [vmem:[%s3 + $0x2a0] sm:$0xff]
    %v672 = vld [vmem:[%s3 + $0x2a8] sm:$0xff]
    %v673 = vld [vmem:[%s3 + $0x2b0] sm:$0xff]
    %v674 = vld [vmem:[%s3 + $0x2b8] sm:$0xff]
    %v675 = vld [vmem:[%s3 + $0x2c0] sm:$0xff]
    %v676 = vld [vmem:[%s3 + $0x2c8] sm:$0xff]
    %v677 = vld [vmem:[%s3 + $0x2d0] sm:$0xff]
    %v678 = vld [vmem:[%s3 + $0x2d8] sm:$0xff]
    %v679 = vld [vmem:[%s3 + $0x2e0] sm:$0xff]
    %v680 = vld [vmem:[%s3 + $0x2e8] sm:$0xff]
    %v681 = vld [vmem:[%s3 + $0x2f0] sm:$0xff]
    %v682 = vld [vmem:[%s3 + $0x2f8] sm:$0xff]
    %v683 = vld [vmem:[%s3 + $0x300] sm:$0xff]
    %v684 = vld [vmem:[%s3 + $0x308] sm:$0xff]
    %v685 = vld [vmem:[%s3 + $0x310] sm:$0xff]
    %v686 = vld [vmem:[%s3 + $0x318] sm:$0xff]
    %v687 = vld [vmem:[%s3 + $0x320] sm:$0xff]
    %v688 = vld [vmem:[%s3 + $0x328] sm:$0xff]
    %v689 = vld [vmem:[%s3 + $0x330] sm:$0xff]
    %v690 = vld [vmem:[%s3 + $0x338] sm:$0xff]
    %v691 = vld [vmem:[%s3 + $0x340] sm:$0xff]
    %v692 = vld [vmem:[%s3 + $0x348] sm:$0xff]
    %v693 = vld [vmem:[%s3 + $0x350] sm:$0xff]
    %v694 = vld [vmem:[%s3 + $0x358] sm:$0xff]
    %v695 = vld [vmem:[%s3 + $0x360] sm:$0xff]
    %v696 = vld [vmem:[%s3 + $0x368] sm:$0xff]
    %v697 = vld [vmem:[%s3 + $0x370] sm:$0xff]
    %v698 = vld [vmem:[%s3 + $0x378] sm:$0xff]
    %v699 = vld [vmem:[%s3 + $0x380] sm:$0xff]
    %v700 = vld [vmem:[%s3 + $0x388] sm:$0xff]
    %v701 = vld [vmem:[%s3 + $0x390] sm:$0xff]
    %v702 = vld [vmem:[%s3 + $0x398] sm:$0xff]
    %v703 = vld [vmem:[%s3 + $0x3a0] sm:$0xff]
    %v704 = vld [vmem:[%s3 + $0x3a8] sm:$0xff]
    %v705 = vld [vmem:[%s3 + $0x3b0] sm:$0xff]
    %v706 = vld [vmem:[%s3 + $0x3b8] sm:$0xff]
    %v707 = vld [vmem:[%s3 + $0x3c0] sm:$0xff]
    %v708 = vld [vmem:[%s3 + $0x3c8] sm:$0xff]
    %v709 = vld [vmem:[%s3 + $0x3d0] sm:$0xff]
    %v710 = vld [vmem:[%s3 + $0x3d8] sm:$0xff]
    %v711 = vld [vmem:[%s3 + $0x3e0] sm:$0xff]
    %v712 = vld [vmem:[%s3 + $0x3e8] sm:$0xff]
    %v713 = vld [vmem:[%s3 + $0x3f0] sm:$0xff]
    %v714 = vld [vmem:[%s3 + $0x3f8] sm:$0xff]
    %v715 = vld [vmem:[%s4] sm:$0xf]
    %v717 = vlaneseq
    %v718 = vshrl.u32 %v717, 7
    %v719 = vsub.s32 0, %v718
    %v720 = vrot.slane %v715, %v719
    %v721 = vlaneseq
    %v722 = vshrl.u32 %v721, 7
    %v723 = vsub.s32 1, %v722
    %v724 = vrot.slane %v715, %v723
    %v725 = vlaneseq
    %v726 = vshrl.u32 %v725, 7
    %v727 = vsub.s32 2, %v726
    %v728 = vrot.slane %v715, %v727
    %v729 = vlaneseq
    %v730 = vshrl.u32 %v729, 7
    %v731 = vsub.s32 3, %v730
    %v732 = vrot.slane %v715, %v731
    %737 = vmatprep.subr.mxu0 %v588
    %738 = vmatpush1.msra.mxu0 %v587
    %739 = vmatprep.subr.mxu0 %v592
    %740 = vmatpush1.msra.mxu0 %v591
    %741 = vmatprep.subr.mxu0 %v596
    %742 = vmatpush1.msra.mxu0 %v595
    %743 = vmatprep.subr.mxu0 %v600
    %744 = vmatpush1.msra.mxu0 %v599
    %745 = vmatprep.subr.mxu0 %v604
    %746 = vmatpush1.msra.mxu0 %v603
    %747 = vmatprep.subr.mxu0 %v608
    %748 = vmatpush1.msra.mxu0 %v607
    %749 = vmatprep.subr.mxu0 %v612
    %750 = vmatpush1.msra.mxu0 %v611
    %751 = vmatprep.subr.mxu0 %v616
    %752 = vmatpush1.msra.mxu0 %v615
    %753 = vmatprep.subr.mxu0 %v620
    %754 = vmatpush1.msra.mxu0 %v619
    %755 = vmatprep.subr.mxu0 %v624
    %756 = vmatpush1.msra.mxu0 %v623
    %757 = vmatprep.subr.mxu0 %v628
    %758 = vmatpush1.msra.mxu0 %v627
    %759 = vmatprep.subr.mxu0 %v632
    %760 = vmatpush1.msra.mxu0 %v631
    %761 = vmatprep.subr.mxu0 %v636
    %762 = vmatpush1.msra.mxu0 %v635
    %763 = vmatprep.subr.mxu0 %v640
    %764 = vmatpush1.msra.mxu0 %v639
    %765 = vmatprep.subr.mxu0 %v644
    %766 = vmatpush1.msra.mxu0 %v643
    %767 = vmatprep.subr.mxu0 %v648
    %768 = vmatpush1.msra.mxu0 %v647
    %769 = vmatprep.subr.mxu0 %v652
    %770 = vmatpush1.msra.mxu0 %v651
    %771 = vmatprep.subr.mxu0 %v656
    %772 = vmatpush1.msra.mxu0 %v655
    %773 = vmatprep.subr.mxu0 %v660
    %774 = vmatpush1.msra.mxu0 %v659
    %775 = vmatprep.subr.mxu0 %v664
    %776 = vmatpush1.msra.mxu0 %v663
    %777 = vmatprep.subr.mxu0 %v668
    %778 = vmatpush1.msra.mxu0 %v667
    %779 = vmatprep.subr.mxu0 %v672
    %780 = vmatpush1.msra.mxu0 %v671
    %781 = vmatprep.subr.mxu0 %v676
    %782 = vmatpush1.msra.mxu0 %v675
    %783 = vmatprep.subr.mxu0 %v680
    %784 = vmatpush1.msra.mxu0 %v679
    %785 = vmatprep.subr.mxu0 %v684
    %786 = vmatpush1.msra.mxu0 %v683
    %787 = vmatprep.subr.mxu0 %v688
    %788 = vmatpush1.msra.mxu0 %v687
    %789 = vmatprep.subr.mxu0 %v692
    %790 = vmatpush1.msra.mxu0 %v691
    %791 = vmatprep.subr.mxu0 %v696
    %792 = vmatpush1.msra.mxu0 %v695
    %793 = vmatprep.subr.mxu0 %v700
    %794 = vmatpush1.msra.mxu0 %v699
    %795 = vmatprep.subr.mxu0 %v704
    %796 = vmatpush1.msra.mxu0 %v703
    %797 = vmatprep.subr.mxu0 %v708
    %798 = vmatpush1.msra.mxu0 %v707
    %799 = vmatprep.subr.mxu0 %v712
    %800 = vmatpush1.msra.mxu0 %v711
    %801 = vmatprep.mubr.f32.mxu0 %v584
    %802 = vmatmul.mubr.f32.gmra.mrb[0].mxu0 %v583
    %v803 = vpop.f32.mrb[0].mxu0
    %v804 = vadd.f32 %v720, %v803
    %v805 = vpop.f32.mrb[0].mxu0
    %v806 = vadd.f32 %v724, %v805
    %807 = vmatprep.mubr.f32.mxu0 %v586
    %808 = vmatmul.mubr.f32.gmra.mrb[0].mxu0 %v585
    %v809 = vpop.f32.mrb[0].mxu0
    %v810 = vadd.f32 %v720, %v809
    %v811 = vpop.f32.mrb[0].mxu0
    %v812 = vadd.f32 %v724, %v811
    %813 = vdwg.mxu0
    %814 = vmatprep.subr.mxu0 %v590
    %815 = vmatpush1.msra.mxu0 %v589
    %816 = vmatprep.subr.mxu0 %v594
    %817 = vmatpush1.msra.mxu0 %v593
    %818 = vmatprep.subr.mxu0 %v598
    %819 = vmatpush1.msra.mxu0 %v597
    %820 = vmatprep.subr.mxu0 %v602
    %821 = vmatpush1.msra.mxu0 %v601
    %822 = vmatprep.subr.mxu0 %v606
    %823 = vmatpush1.msra.mxu0 %v605
    %824 = vmatprep.subr.mxu0 %v610
    %825 = vmatpush1.msra.mxu0 %v609
    %826 = vmatprep.subr.mxu0 %v614
    %827 = vmatpush1.msra.mxu0 %v613
    %828 = vmatprep.subr.mxu0 %v618
    %829 = vmatpush1.msra.mxu0 %v617
    %830 = vmatprep.subr.mxu0 %v622
    %831 = vmatpush1.msra.mxu0 %v621
    %832 = vmatprep.subr.mxu0 %v626
    %833 = vmatpush1.msra.mxu0 %v625
    %834 = vmatprep.subr.mxu0 %v630
    %835 = vmatpush1.msra.mxu0 %v629
    %836 = vmatprep.subr.mxu0 %v634
    %837 = vmatpush1.msra.mxu0 %v633
    %838 = vmatprep.subr.mxu0 %v638
    %839 = vmatpush1.msra.mxu0 %v637
    %840 = vmatprep.subr.mxu0 %v642
    %841 = vmatpush1.msra.mxu0 %v641
    %842 = vmatprep.subr.mxu0 %v646
    %843 = vmatpush1.msra.mxu0 %v645
    %844 = vmatprep.subr.mxu0 %v650
    %845 = vmatpush1.msra.mxu0 %v649
    %846 = vmatprep.subr.mxu0 %v654
    %847 = vmatpush1.msra.mxu0 %v653
    %848 = vmatprep.subr.mxu0 %v658
    %849 = vmatpush1.msra.mxu0 %v657
    %850 = vmatprep.subr.mxu0 %v662
    %851 = vmatpush1.msra.mxu0 %v661
    %852 = vmatprep.subr.mxu0 %v666
    %853 = vmatpush1.msra.mxu0 %v665
    %854 = vmatprep.subr.mxu0 %v670
    %855 = vmatpush1.msra.mxu0 %v669
    %856 = vmatprep.subr.mxu0 %v674
    %857 = vmatpush1.msra.mxu0 %v673
    %858 = vmatprep.subr.mxu0 %v678
    %859 = vmatpush1.msra.mxu0 %v677
    %860 = vmatprep.subr.mxu0 %v682
    %861 = vmatpush1.msra.mxu0 %v681
    %862 = vmatprep.subr.mxu0 %v686
    %863 = vmatpush1.msra.mxu0 %v685
    %864 = vmatprep.subr.mxu0 %v690
    %865 = vmatpush1.msra.mxu0 %v689
    %866 = vmatprep.subr.mxu0 %v694
    %867 = vmatpush1.msra.mxu0 %v693
    %868 = vmatprep.subr.mxu0 %v698
    %869 = vmatpush1.msra.mxu0 %v697
    %870 = vmatprep.subr.mxu0 %v702
    %871 = vmatpush1.msra.mxu0 %v701
    %872 = vmatprep.subr.mxu0 %v706
    %873 = vmatpush1.msra.mxu0 %v705
    %874 = vmatprep.subr.mxu0 %v710
    %875 = vmatpush1.msra.mxu0 %v709
    %876 = vmatprep.subr.mxu0 %v714
    %877 = vmatpush1.msra.mxu0 %v713
    %878 = vmatprep.mubr.f32.mxu0 %v584
    %879 = vmatmul.mubr.f32.gmra.mrb[0].mxu0 %v583
    %v880 = vpop.f32.mrb[0].mxu0
    %v881 = vadd.f32 %v728, %v880
    %v882 = vpop.f32.mrb[0].mxu0
    %v883 = vadd.f32 %v732, %v882
    %884 = vmatprep.mubr.f32.mxu0 %v586
    %885 = vmatmul.mubr.f32.gmra.mrb[0].mxu0 %v585
    %v886 = vpop.f32.mrb[0].mxu0
    %v887 = vadd.f32 %v728, %v886
    %v888 = vpop.f32.mrb[0].mxu0
    %v889 = vadd.f32 %v732, %v888
    %890 = vdwg.mxu0
    %v891 = vmax.f32 %v804, 0.0
    %v892 = vmax.f32 %v806, 0.0
    %v893 = vmax.f32 %v881, 0.0
    %v894 = vmax.f32 %v883, 0.0
    %v895 = vmax.f32 %v810, 0.0
    %v896 = vmax.f32 %v812, 0.0
    %v897 = vmax.f32 %v887, 0.0
    %v898 = vmax.f32 %v889, 0.0
    %v899 = vld [vmem:[%s5] sm:$0xff]
    %v900 = vld [vmem:[%s5 + $0x8] sm:$0xff]
    %v901 = vld [vmem:[%s5 + $0x10] sm:$0xff]
    %v902 = vld [vmem:[%s5 + $0x18] sm:$0xff]
    %v903 = vld [vmem:[%s5 + $0x20] sm:$0xff]
    %v904 = vld [vmem:[%s5 + $0x28] sm:$0xff]
    %v905 = vld [vmem:[%s5 + $0x30] sm:$0xff]
    %v906 = vld [vmem:[%s5 + $0x38] sm:$0xff]
    %v907 = vld [vmem:[%s5 + $0x40] sm:$0xff]
    %v908 = vld [vmem:[%s5 + $0x48] sm:$0xff]
    %v909 = vld [vmem:[%s5 + $0x50] sm:$0xff]
    %v910 = vld [vmem:[%s5 + $0x58] sm:$0xff]
    %v911 = vld [vmem:[%s5 + $0x60] sm:$0xff]
    %v912 = vld [vmem:[%s5 + $0x68] sm:$0xff]
    %v913 = vld [vmem:[%s5 + $0x70] sm:$0xff]
    %v914 = vld [vmem:[%s5 + $0x78] sm:$0xff]
    %v915 = vld [vmem:[%s5 + $0x80] sm:$0xff]
    %v916 = vld [vmem:[%s5 + $0x88] sm:$0xff]
    %v917 = vld [vmem:[%s5 + $0x90] sm:$0xff]
    %v918 = vld [vmem:[%s5 + $0x98] sm:$0xff]
    %v919 = vld [vmem:[%s5 + $0xa0] sm:$0xff]
    %v920 = vld [vmem:[%s5 + $0xa8] sm:$0xff]
    %v921 = vld [vmem:[%s5 + $0xb0] sm:$0xff]
    %v922 = vld [vmem:[%s5 + $0xb8] sm:$0xff]
    %v923 = vld [vmem:[%s5 + $0xc0] sm:$0xff]
    %v924 = vld [vmem:[%s5 + $0xc8] sm:$0xff]
    %v925 = vld [vmem:[%s5 + $0xd0] sm:$0xff]
    %v926 = vld [vmem:[%s5 + $0xd8] sm:$0xff]
    %v927 = vld [vmem:[%s5 + $0xe0] sm:$0xff]
    %v928 = vld [vmem:[%s5 + $0xe8] sm:$0xff]
    %v929 = vld [vmem:[%s5 + $0xf0] sm:$0xff]
    %v930 = vld [vmem:[%s5 + $0xf8] sm:$0xff]
    %v931 = vld [vmem:[%s5 + $0x100] sm:$0xff]
    %v932 = vld [vmem:[%s5 + $0x108] sm:$0xff]
    %v933 = vld [vmem:[%s5 + $0x110] sm:$0xff]
    %v934 = vld [vmem:[%s5 + $0x118] sm:$0xff]
    %v935 = vld [vmem:[%s5 + $0x120] sm:$0xff]
    %v936 = vld [vmem:[%s5 + $0x128] sm:$0xff]
    %v937 = vld [vmem:[%s5 + $0x130] sm:$0xff]
    %v938 = vld [vmem:[%s5 + $0x138] sm:$0xff]
    %v939 = vld [vmem:[%s5 + $0x140] sm:$0xff]
    %v940 = vld [vmem:[%s5 + $0x148] sm:$0xff]
    %v941 = vld [vmem:[%s5 + $0x150] sm:$0xff]
    %v942 = vld [vmem:[%s5 + $0x158] sm:$0xff]
    %v943 = vld [vmem:[%s5 + $0x160] sm:$0xff]
    %v944 = vld [vmem:[%s5 + $0x168] sm:$0xff]
    %v945 = vld [vmem:[%s5 + $0x170] sm:$0xff]
    %v946 = vld [vmem:[%s5 + $0x178] sm:$0xff]
    %v947 = vld [vmem:[%s5 + $0x180] sm:$0xff]
    %v948 = vld [vmem:[%s5 + $0x188] sm:$0xff]
    %v949 = vld [vmem:[%s5 + $0x190] sm:$0xff]
    %v950 = vld [vmem:[%s5 + $0x198] sm:$0xff]
    %v951 = vld [vmem:[%s5 + $0x1a0] sm:$0xff]
    %v952 = vld [vmem:[%s5 + $0x1a8] sm:$0xff]
    %v953 = vld [vmem:[%s5 + $0x1b0] sm:$0xff]
    %v954 = vld [vmem:[%s5 + $0x1b8] sm:$0xff]
    %v955 = vld [vmem:[%s5 + $0x1c0] sm:$0xff]
    %v956 = vld [vmem:[%s5 + $0x1c8] sm:$0xff]
    %v957 = vld [vmem:[%s5 + $0x1d0] sm:$0xff]
    %v958 = vld [vmem:[%s5 + $0x1d8] sm:$0xff]
    %v959 = vld [vmem:[%s5 + $0x1e0] sm:$0xff]
    %v960 = vld [vmem:[%s5 + $0x1e8] sm:$0xff]
    %v961 = vld [vmem:[%s5 + $0x1f0] sm:$0xff]
    %v962 = vld [vmem:[%s5 + $0x1f8] sm:$0xff]
    %v963 = vld [vmem:[%s6] sm:$0x1]
    %v965 = vlaneseq
    %v966 = vshrl.u32 %v965, 7
    %v967 = vsub.s32 0, %v966
    %v968 = vrot.slane %v963, %v967
    %970 = vmatprep.subr.mxu0 0.0
    %971 = vmatpush1.msra.mxu0 %v899
    %972 = vmatprep.subr.mxu0 0.0
    %973 = vmatpush1.msra.mxu0 %v900
    %974 = vmatprep.subr.mxu0 0.0
    %975 = vmatpush1.msra.mxu0 %v901
    %976 = vmatprep.subr.mxu0 0.0
    %977 = vmatpush1.msra.mxu0 %v902
    %978 = vmatprep.subr.mxu0 0.0
    %979 = vmatpush1.msra.mxu0 %v903
    %980 = vmatprep.subr.mxu0 0.0
    %981 = vmatpush1.msra.mxu0 %v904
    %982 = vmatprep.subr.mxu0 0.0
    %983 = vmatpush1.msra.mxu0 %v905
    %984 = vmatprep.subr.mxu0 0.0
    %985 = vmatpush1.msra.mxu0 %v906
    %986 = vmatprep.subr.mxu0 0.0
    %987 = vmatpush1.msra.mxu0 %v907
    %988 = vmatprep.subr.mxu0 0.0
    %989 = vmatpush1.msra.mxu0 %v908
    %990 = vmatprep.subr.mxu0 0.0
    %991 = vmatpush1.msra.mxu0 %v909
    %992 = vmatprep.subr.mxu0 0.0
    %993 = vmatpush1.msra.mxu0 %v910
    %994 = vmatprep.subr.mxu0 0.0
    %995 = vmatpush1.msra.mxu0 %v911
    %996 = vmatprep.subr.mxu0 0.0
    %997 = vmatpush1.msra.mxu0 %v912
    %998 = vmatprep.subr.mxu0 0.0
    %999 = vmatpush1.msra.mxu0 %v913
    %1000 = vmatprep.subr.mxu0 0.0
    %1001 = vmatpush1.msra.mxu0 %v914
    %1002 = vmatprep.subr.mxu0 0.0
    %1003 = vmatpush1.msra.mxu0 %v915
    %1004 = vmatprep.subr.mxu0 0.0
    %1005 = vmatpush1.msra.mxu0 %v916
    %1006 = vmatprep.subr.mxu0 0.0
    %1007 = vmatpush1.msra.mxu0 %v917
    %1008 = vmatprep.subr.mxu0 0.0
    %1009 = vmatpush1.msra.mxu0 %v918
    %1010 = vmatprep.subr.mxu0 0.0
    %1011 = vmatpush1.msra.mxu0 %v919
    %1012 = vmatprep.subr.mxu0 0.0
    %1013 = vmatpush1.msra.mxu0 %v920
    %1014 = vmatprep.subr.mxu0 0.0
    %1015 = vmatpush1.msra.mxu0 %v921
    %1016 = vmatprep.subr.mxu0 0.0
    %1017 = vmatpush1.msra.mxu0 %v922
    %1018 = vmatprep.subr.mxu0 0.0
    %1019 = vmatpush1.msra.mxu0 %v923
    %1020 = vmatprep.subr.mxu0 0.0
    %1021 = vmatpush1.msra.mxu0 %v924
    %1022 = vmatprep.subr.mxu0 0.0
    %1023 = vmatpush1.msra.mxu0 %v925
    %1024 = vmatprep.subr.mxu0 0.0
    %1025 = vmatpush1.msra.mxu0 %v926
    %1026 = vmatprep.subr.mxu0 0.0
    %1027 = vmatpush1.msra.mxu0 %v927
    %1028 = vmatprep.subr.mxu0 0.0
    %1029 = vmatpush1.msra.mxu0 %v928
    %1030 = vmatprep.subr.mxu0 0.0
    %1031 = vmatpush1.msra.mxu0 %v929
    %1032 = vmatprep.subr.mxu0 0.0
    %1033 = vmatpush1.msra.mxu0 %v930
    %1034 = vmatprep.mubr.f32.mxu0 %v892
    %1035 = vmatmul.mubr.f32.gmra.mrb[0].mxu0 %v891
    %v1036 = vpop.f32.mrb[0].mxu0
    %v1037 = vadd.f32 %v968, %v1036
    %v1038 = vpop.f32.mrb[0].mxu0
    %1039 = vmatprep.mubr.f32.mxu0 %v896
    %1040 = vmatmul.mubr.f32.gmra.mrb[0].mxu0 %v895
    %v1041 = vpop.f32.mrb[0].mxu0
    %v1042 = vadd.f32 %v968, %v1041
    %v1043 = vpop.f32.mrb[0].mxu0
    %1044 = vdwg.mxu0
    %1045 = vmatprep.subr.mxu0 0.0
    %1046 = vmatpush1.msra.mxu0 %v931
    %1047 = vmatprep.subr.mxu0 0.0
    %1048 = vmatpush1.msra.mxu0 %v932
    %1049 = vmatprep.subr.mxu0 0.0
    %1050 = vmatpush1.msra.mxu0 %v933
    %1051 = vmatprep.subr.mxu0 0.0
    %1052 = vmatpush1.msra.mxu0 %v934
    %1053 = vmatprep.subr.mxu0 0.0
    %1054 = vmatpush1.msra.mxu0 %v935
    %1055 = vmatprep.subr.mxu0 0.0
    %1056 = vmatpush1.msra.mxu0 %v936
    %1057 = vmatprep.subr.mxu0 0.0
    %1058 = vmatpush1.msra.mxu0 %v937
    %1059 = vmatprep.subr.mxu0 0.0
    %1060 = vmatpush1.msra.mxu0 %v938
    %1061 = vmatprep.subr.mxu0 0.0
    %1062 = vmatpush1.msra.mxu0 %v939
    %1063 = vmatprep.subr.mxu0 0.0
    %1064 = vmatpush1.msra.mxu0 %v940
    %1065 = vmatprep.subr.mxu0 0.0
    %1066 = vmatpush1.msra.mxu0 %v941
    %1067 = vmatprep.subr.mxu0 0.0
    %1068 = vmatpush1.msra.mxu0 %v942
    %1069 = vmatprep.subr.mxu0 0.0
    %1070 = vmatpush1.msra.mxu0 %v943
    %1071 = vmatprep.subr.mxu0 0.0
    %1072 = vmatpush1.msra.mxu0 %v944
    %1073 = vmatprep.subr.mxu0 0.0
    %1074 = vmatpush1.msra.mxu0 %v945
    %1075 = vmatprep.subr.mxu0 0.0
    %1076 = vmatpush1.msra.mxu0 %v946
    %1077 = vmatprep.subr.mxu0 0.0
    %1078 = vmatpush1.msra.mxu0 %v947
    %1079 = vmatprep.subr.mxu0 0.0
    %1080 = vmatpush1.msra.mxu0 %v948
    %1081 = vmatprep.subr.mxu0 0.0
    %1082 = vmatpush1.msra.mxu0 %v949
    %1083 = vmatprep.subr.mxu0 0.0
    %1084 = vmatpush1.msra.mxu0 %v950
    %1085 = vmatprep.subr.mxu0 0.0
    %1086 = vmatpush1.msra.mxu0 %v951
    %1087 = vmatprep.subr.mxu0 0.0
    %1088 = vmatpush1.msra.mxu0 %v952
    %1089 = vmatprep.subr.mxu0 0.0
    %1090 = vmatpush1.msra.mxu0 %v953
    %1091 = vmatprep.subr.mxu0 0.0
    %1092 = vmatpush1.msra.mxu0 %v954
    %1093 = vmatprep.subr.mxu0 0.0
    %1094 = vmatpush1.msra.mxu0 %v955
    %1095 = vmatprep.subr.mxu0 0.0
    %1096 = vmatpush1.msra.mxu0 %v956
    %1097 = vmatprep.subr.mxu0 0.0
    %1098 = vmatpush1.msra.mxu0 %v957
    %1099 = vmatprep.subr.mxu0 0.0
    %1100 = vmatpush1.msra.mxu0 %v958
    %1101 = vmatprep.subr.mxu0 0.0
    %1102 = vmatpush1.msra.mxu0 %v959
    %1103 = vmatprep.subr.mxu0 0.0
    %1104 = vmatpush1.msra.mxu0 %v960
    %1105 = vmatprep.subr.mxu0 0.0
    %1106 = vmatpush1.msra.mxu0 %v961
    %1107 = vmatprep.subr.mxu0 0.0
    %1108 = vmatpush1.msra.mxu0 %v962
    %1109 = vmatprep.mubr.f32.mxu0 %v894
    %1110 = vmatmul.mubr.f32.gmra.mrb[0].mxu0 %v893
    %v1111 = vpop.f32.mrb[0].mxu0
    %v1112 = vadd.f32 %v1037, %v1111
    %v1113 = vpop.f32.mrb[0].mxu0
    %1114 = vmatprep.mubr.f32.mxu0 %v898
    %1115 = vmatmul.mubr.f32.gmra.mrb[0].mxu0 %v897
    %v1116 = vpop.f32.mrb[0].mxu0
    %v1117 = vadd.f32 %v1042, %v1116
    %v1118 = vpop.f32.mrb[0].mxu0
    %1119 = vdwg.mxu0
    %v1120 = vmax.f32 %v1112, 0.0
    %v1121 = vmax.f32 %v1117, 0.0
    %v1122 = vld [vmem:[%s7] sm:$0xff]
    %v1123 = vld [vmem:[%s7 + $0x8] sm:$0xff]
    %v1124 = vld [vmem:[%s7 + $0x10] sm:$0xff]
    %v1125 = vld [vmem:[%s7 + $0x18] sm:$0xff]
    %v1126 = vld [vmem:[%s7 + $0x20] sm:$0xff]
    %v1127 = vld [vmem:[%s7 + $0x28] sm:$0xff]
    %v1128 = vld [vmem:[%s7 + $0x30] sm:$0xff]
    %v1129 = vld [vmem:[%s7 + $0x38] sm:$0xff]
    %v1130 = vld [vmem:[%s8] sm:$0x1]
    %v1132 = vlaneseq
    %v1133 = vshrl.u32 %v1132, 7
    %v1134 = vsub.s32 0, %v1133
    %v1135 = vrot.slane %v1130, %v1134
    %vm1137 = vcmask 523264
    %v1139 = vsel %vm1137, %v1120, 0
    %v1142 = vsel %vm1137, %v1121, 0
    %1144 = vmatprep.subr.mxu0 0.0
    %1145 = vmatpush1.msra.mxu0 %v1122
    %1146 = vmatprep.subr.mxu0 0.0
    %1147 = vmatpush1.msra.mxu0 %v1123
    %1148 = vmatprep.subr.mxu0 0.0
    %1149 = vmatpush1.msra.mxu0 %v1124
    %1150 = vmatprep.subr.mxu0 0.0
    %1151 = vmatpush1.msra.mxu0 %v1125
    %1152 = vmatprep.subr.mxu0 0.0
    %1153 = vmatpush1.msra.mxu0 %v1126
    %1154 = vmatprep.subr.mxu0 0.0
    %1155 = vmatpush1.msra.mxu0 %v1127
    %1156 = vmatprep.subr.mxu0 0.0
    %1157 = vmatpush1.msra.mxu0 %v1128
    %1158 = vmatprep.subr.mxu0 0.0
    %1159 = vmatpush1.msra.mxu0 %v1129
    %1160 = vmatprep.subr.mxu0 0.0
    %1161 = vmatpush1.msra.mxu0 0.0
    %1162 = vmatprep.subr.mxu0 0.0
    %1163 = vmatpush1.msra.mxu0 0.0
    %1164 = vmatprep.subr.mxu0 0.0
    %1165 = vmatpush1.msra.mxu0 0.0
    %1166 = vmatprep.subr.mxu0 0.0
    %1167 = vmatpush1.msra.mxu0 0.0
    %1168 = vmatprep.subr.mxu0 0.0
    %1169 = vmatpush1.msra.mxu0 0.0
    %1170 = vmatprep.subr.mxu0 0.0
    %1171 = vmatpush1.msra.mxu0 0.0
    %1172 = vmatprep.subr.mxu0 0.0
    %1173 = vmatpush1.msra.mxu0 0.0
    %1174 = vmatprep.subr.mxu0 0.0
    %1175 = vmatpush1.msra.mxu0 0.0
    %1176 = vmatprep.subr.mxu0 0.0
    %1177 = vmatpush1.msra.mxu0 0.0
    %1178 = vmatprep.subr.mxu0 0.0
    %1179 = vmatpush1.msra.mxu0 0.0
    %1180 = vmatprep.subr.mxu0 0.0
    %1181 = vmatpush1.msra.mxu0 0.0
    %1182 = vmatprep.subr.mxu0 0.0
    %1183 = vmatpush1.msra.mxu0 0.0
    %1184 = vmatprep.subr.mxu0 0.0
    %1185 = vmatpush1.msra.mxu0 0.0
    %1186 = vmatprep.subr.mxu0 0.0
    %1187 = vmatpush1.msra.mxu0 0.0
    %1188 = vmatprep.subr.mxu0 0.0
    %1189 = vmatpush1.msra.mxu0 0.0
    %1190 = vmatprep.subr.mxu0 0.0
    %1191 = vmatpush1.msra.mxu0 0.0
    %1192 = vmatprep.subr.mxu0 0.0
    %1193 = vmatpush1.msra.mxu0 0.0
    %1194 = vmatprep.subr.mxu0 0.0
    %1195 = vmatpush1.msra.mxu0 0.0
    %1196 = vmatprep.subr.mxu0 0.0
    %1197 = vmatpush1.msra.mxu0 0.0
    %1198 = vmatprep.subr.mxu0 0.0
    %1199 = vmatpush1.msra.mxu0 0.0
    %1200 = vmatprep.subr.mxu0 0.0
    %1201 = vmatpush1.msra.mxu0 0.0
    %1202 = vmatprep.subr.mxu0 0.0
    %1203 = vmatpush1.msra.mxu0 0.0
    %1204 = vmatprep.subr.mxu0 0.0
    %1205 = vmatpush1.msra.mxu0 0.0
    %1206 = vmatprep.subr.mxu0 0.0
    %1207 = vmatpush1.msra.mxu0 0.0
    %1208 = vmatprep.mubr.f32.mxu0 0.0
    %1209 = vmatmul.mubr.f32.gmra.mrb[0].mxu0 %v1139
    %v1210 = vpop.f32.mrb[0].mxu0
    %v1211 = vadd.f32 %v1135, %v1210
    %v1212 = vpop.f32.mrb[0].mxu0
    %1213 = vmatprep.mubr.f32.mxu0 0.0
    %1214 = vmatmul.mubr.f32.gmra.mrb[0].mxu0 %v1142
    %v1215 = vpop.f32.mrb[0].mxu0
    %v1216 = vadd.f32 %v1135, %v1215
    %v1217 = vpop.f32.mrb[0].mxu0
    %1218 = vdwg.mxu0
    %v1219 = vmax.f32 %v1211, 0.0
    %v1220 = vmax.f32 %v1216, 0.0
    %1221 = vst [vmem:[%s9] sm:$0xff] %v1219
    %1222 = vst [vmem:[%s9 + $0x8] sm:$0xff] %v1220
    // Predicated region
    $region42: #{mnist_convnet_forward.1} parent=1 // pred_check
      _
    $region43: #{mnist_convnet_forward.1} parent=1 // pred_check_branch
      %1224 = sbr.rel (0) target = $region45
    $region44: #{mnist_convnet_forward.1} parent=1 // pred_region
      _
    $region45: #{mnist_convnet_forward.1} parent=1 // pred_fallthru
      _
    // Predicated region
    $region46: #{mnist_convnet_forward.1} parent=1 // pred_check
      _
    $region47: #{mnist_convnet_forward.1} parent=1 // pred_check_branch
      %1226 = sbr.rel (0) target = $region49
    $region48: #{mnist_convnet_forward.1} parent=1 // pred_region
      _
    $region49: #{mnist_convnet_forward.1} parent=1 // pred_fallthru
      _
    %1227 = vsyncpa [#allocation3], 1

</llo_original>
